<compile_context>
chip_gen: v6e
topology: v6e:2x2x1
jax: 0.10.0
libtpu: 0.0.40
codegen_flags: <defaults>
</compile_context>

<pallas_src>
import jax
import jax.numpy as jnp
from jax.experimental import pallas as pl
from jax.experimental.pallas import tpu as pltpu


def _nonlocal_tem_kernel_vpu(x_ref, w_all_ref, b_all_ref, ww_ref, bw_ref, o_ref):
    """Tiny-channel path: pure VPU broadcast-MACs, no reshapes / relayouts."""
    _, C, T, L = x_ref.shape
    threec = w_all_ref.shape[0]
    c = threec // 3

    xc = [x_ref[0, ci] for ci in range(C)]            # C x (T, L) f32 tiles

    def proj_row(o):                                   # 1x1-conv row o via scalar MACs
        acc = w_all_ref[o:o + 1, 0:1] * xc[0]
        for ci in range(1, C):
            acc = acc + w_all_ref[o:o + 1, ci:ci + 1] * xc[ci]
        return acc + b_all_ref[o:o + 1, 0:1]

    theta = [proj_row(o) for o in range(c)]            # rows pre-scaled by 1/T
    phi = [proj_row(c + o) for o in range(c)]
    g = [proj_row(2 * c + o) for o in range(c)]

    # Streamed temporal attention: build f_i (T, L) for one key index i and
    # fold it into y immediately -- no (T,T,L) / (c,T,T,L) temporaries.
    y = [jnp.zeros((T, L), jnp.float32) for _ in range(c)]
    for i in range(T):
        f_i = phi[0][i:i + 1, :] * theta[0]
        for cc in range(1, c):
            f_i = f_i + phi[cc][i:i + 1, :] * theta[cc]
        for co in range(c):
            y[co] = y[co] + g[co][i:i + 1, :] * f_i

    # W (1x1 conv, BN folded) + residual.
    for co in range(C):
        acc = xc[co] + bw_ref[co:co + 1, 0:1]
        for cc in range(c):
            acc = acc + ww_ref[co:co + 1, cc:cc + 1] * y[cc]
        o_ref[0, co] = acc


def _nonlocal_tem_kernel_mxu(x_ref, w_all_ref, b_all_ref, ww_ref, bw_ref, o_ref):
    """Large-channel path: one fused theta|phi|g MXU matmul (bf16 in, f32 acc)."""
    _, C, T, L = x_ref.shape
    threec = w_all_ref.shape[0]
    c = threec // 3
    mx_dtype = w_all_ref.dtype

    x = x_ref[0]                                       # (C, T, L) f32
    x2d = x.astype(mx_dtype).reshape(C, T * L)

    # Single MXU push for all three 1x1 projections (weights stacked to 3c).
    p = jnp.dot(w_all_ref[...], x2d, preferred_element_type=jnp.float32)
    p = (p + b_all_ref[...]).reshape(threec, T, L)     # (3c, T, L) f32
    theta = p[0:c]                                     # pre-scaled by 1/T
    phi = p[c:2 * c]
    g = p[2 * c:3 * c]

    # Streamed attention over the key index i: live set stays O(c*T*L); the
    # (c, T, T, L) broadcast product is never materialized.
    y = jnp.zeros((c, T, L), jnp.float32)
    for i in range(T):
        f_i = jnp.sum(phi[:, i:i + 1, :] * theta, axis=0)     # (T, L)
        y = y + g[:, i:i + 1, :] * f_i[None, :, :]

    wy = jnp.dot(ww_ref[...], y.astype(mx_dtype).reshape(c, T * L),
                 preferred_element_type=jnp.float32) + bw_ref[...]
    o_ref[0] = wy.reshape(C, T, L) + x


def _pick_spatial_tile(S, C, c, T, vmem_budget, max_tile=1024):
    """Largest lane-dense tile that divides S and fits a conservative VMEM budget."""
    def need(tile):
        io = 4 * C * T * tile * 4            # double-buffered input + output blocks
        act = 8 * c * T * tile * 4           # theta/phi/g + y + streaming temporaries
        return io + act

    cands = [t for t in range(128, min(S, max_tile) + 1, 128) if S % t == 0]
    if not cands:
        return S                             # small spatial extent: take it whole
    best = cands[0]
    for t in cands:
        if need(t) <= int(0.6 * vmem_budget):
            best = t
    return best


def nonlocal_block_tem(x, params, *, spatial_tile=None, use_mxu=None,
                       mxu_dtype=jnp.bfloat16):
    b, C, T, H, W = x.shape
    S = H * W
    c = params["w_theta"].shape[0]
    if use_mxu is None:
        # With only a handful of channels the MXU systolic array would be <2%
        # utilized; route tiny configs to the pure-VPU kernel instead.
        use_mxu = C >= 16

    xr = x.reshape(b, C, T, S).astype(jnp.float32)

    # ---- parameter prep (done once, outside the kernel) ----------------------
    eps = 1e-5
    scale = params["bn_gamma"] / jnp.sqrt(params["bn_var"] + eps)   # eval-mode BN
    ww_eff = params["w_w"] * scale[:, None]
    bw_eff = scale * (params["b_w"] - params["bn_mean"]) + params["bn_beta"]

    inv_t = jnp.float32(1.0 / T)                  # fold f/N (N = T) into theta
    w_all = jnp.concatenate([params["w_theta"] * inv_t,
                             params["w_phi"], params["w_g"]], axis=0)   # (3c, C)
    b_all = jnp.concatenate([params["b_theta"] * inv_t,
                             params["b_phi"], params["b_g"]]).reshape(3 * c, 1)
    bw = bw_eff.reshape(C, 1).astype(jnp.float32)
    b_all = b_all.astype(jnp.float32)

    mm_dtype = mxu_dtype if use_mxu else jnp.float32
    w_all = w_all.astype(mm_dtype)
    ww = ww_eff.astype(mm_dtype)

    # ---- VMEM budget & tile selection ----------------------------------------
    vmem_cap = 64 * 1024 * 1024                   # conservative: v7x per-core VMEM
    try:
        cap = getattr(pltpu.get_tpu_info(), "vmem_capacity_bytes", None)
        if cap:
            vmem_cap = int(cap)
    except Exception:
        pass
    vmem_limit = int(min(vmem_cap - 8 * 1024 * 1024, 100 * 1024 * 1024))

    if spatial_tile is None:
        spatial_tile = _pick_spatial_tile(S, C, c, T, vmem_limit)
    assert S % spatial_tile == 0, "spatial extent must divide by spatial_tile"

    # NOTE: the (1, C, T, spatial_tile) block is legal because T is the full
    # extent of its dimension (no multiple-of-8 requirement on T itself).
    x_spec = pl.BlockSpec((1, C, T, spatial_tile), lambda bi, si: (bi, 0, 0, si))

    def _full(a):
        return pl.BlockSpec(a.shape, lambda bi, si, _nd=a.ndim: (0,) * _nd)

    kernel = _nonlocal_tem_kernel_mxu if use_mxu else _nonlocal_tem_kernel_vpu
    grid = (b, S // spatial_tile)
    out = pl.pallas_call(
        kernel,
        out_shape=jax.ShapeDtypeStruct((b, C, T, S), jnp.float32),
        grid_spec=pltpu.PrefetchScalarGridSpec(
            num_scalar_prefetch=0,
            grid=grid,
            in_specs=[x_spec, _full(w_all), _full(b_all), _full(ww), _full(bw)],
            out_specs=x_spec,
        ),
        compiler_params=pltpu.CompilerParams(
            dimension_semantics=("parallel", "parallel"),
            vmem_limit_bytes=vmem_limit),
    )(xr, w_all, b_all, ww, bw)
    return out.reshape(b, C, T, H, W)


def nonlocal_block_tem_ref(x, params, *, matmul_dtype=jnp.float32):
    """Pure-JAX reference mirroring the PyTorch forward (sub_sample=False).

    matmul_dtype lets the reference mirror the kernel's bf16 MXU operands so
    the comparison isolates kernel bugs from dtype rounding.
    """
    b, C, T, H, W = x.shape
    S = H * W
    xr = x.reshape(b, C, T, S).astype(jnp.float32)
    eps = 1e-5
    scale = params["bn_gamma"] / jnp.sqrt(params["bn_var"] + eps)
    ww_eff = params["w_w"] * scale[:, None]
    bw_eff = scale * (params["b_w"] - params["bn_mean"]) + params["bn_beta"]
    inv_t = 1.0 / T
    hi = jax.lax.Precision.HIGHEST
    xm = xr.astype(matmul_dtype)

    def proj(w, bias):
        return (jnp.einsum("oc,bcts->bots", w.astype(matmul_dtype), xm,
                           precision=hi, preferred_element_type=jnp.float32)
                + bias[None, :, None, None])

    theta = proj(params["w_theta"] * inv_t, params["b_theta"] * inv_t)
    phi = proj(params["w_phi"], params["b_phi"])
    g = proj(params["w_g"], params["b_g"])
    f = jnp.einsum("bois,bojs->bijs", phi, theta, precision=hi,
                   preferred_element_type=jnp.float32)
    y = jnp.einsum("bois,bijs->bojs", g, f, precision=hi,
                   preferred_element_type=jnp.float32)
    wy = (jnp.einsum("oc,bcts->bots", ww_eff.astype(matmul_dtype),
                     y.astype(matmul_dtype), precision=hi,
                     preferred_element_type=jnp.float32)
          + bw_eff[None, :, None, None])
    return (wy + xr).reshape(b, C, T, H, W)


if __name__ == "__main__":
    key = jax.random.PRNGKey(0)

    def make_params(k, C, c):
        ks = jax.random.split(k, 10)
        return {
            "w_theta": 0.1 * jax.random.normal(ks[0], (c, C), jnp.float32),
            "b_theta": 0.1 * jax.random.normal(ks[1], (c,), jnp.float32),
            "w_phi":   0.1 * jax.random.normal(ks[2], (c, C), jnp.float32),
            "b_phi":   0.1 * jax.random.normal(ks[3], (c,), jnp.float32),
            "w_g":     0.1 * jax.random.normal(ks[4], (c, C), jnp.float32),
            "b_g":     0.1 * jax.random.normal(ks[5], (c,), jnp.float32),
            "w_w":     0.1 * jax.random.normal(ks[6], (C, c), jnp.float32),
            "b_w":     0.1 * jax.random.normal(ks[7], (C,), jnp.float32),
            # The PyTorch module zero-inits BN gamma/beta (making z == x);
            # nonzero values are used so the kernel compute is exercised.
            "bn_gamma": 1.0 + 0.1 * jax.random.normal(ks[8], (C,), jnp.float32),
            "bn_beta":  0.1 * jax.random.normal(ks[9], (C,), jnp.float32),
            "bn_mean":  jnp.zeros((C,), jnp.float32),
            "bn_var":   jnp.ones((C,), jnp.float32),
        }

    k1, k2, k3, k4 = jax.random.split(key, 4)

    # --- config 1: tiny channels (exercises the reshape-free VPU path) --------
    b1, C1, T1, H1, W1 = 2, 4, 8, 16, 16
    p1 = make_params(k1, C1, C1 // 2)
    x1 = jax.random.normal(k2, (b1, C1, T1, H1, W1), jnp.float32)
    z1 = jax.block_until_ready(nonlocal_block_tem(x1, p1))
    z1_ref = nonlocal_block_tem_ref(x1, p1)
    err1 = float(jnp.max(jnp.abs(z1 - z1_ref)))
    assert z1.shape == x1.shape
    assert jnp.allclose(z1, z1_ref, atol=1e-4, rtol=1e-4), err1

    # --- config 2: wider channels (exercises the fused bf16 MXU path) ----------
    b2, C2, T2, H2, W2 = 1, 64, 8, 16, 16
    p2 = make_params(k3, C2, C2 // 2)
    x2 = jax.random.normal(k4, (b2, C2, T2, H2, W2), jnp.float32)
    z2 = jax.block_until_ready(nonlocal_block_tem(x2, p2))
    z2_ref = nonlocal_block_tem_ref(x2, p2, matmul_dtype=jnp.bfloat16)
    err2 = float(jnp.max(jnp.abs(z2 - z2_ref)))
    assert z2.shape == x2.shape
    assert jnp.allclose(z2, z2_ref, atol=2e-2, rtol=2e-2), err2

    print("KERNEL_OK")
</pallas_src>

<mosaic_0001>
module attributes {stable_mosaic.version = 11 : i64} {
  func.func @_nonlocal_tem_kernel_vpu(%arg0: i32, %arg1: i32, %arg2: memref<1x4x8x256xf32, #tpu.memory_space<vmem>>, %arg3: memref<6x4xf32, #tpu.memory_space<vmem>>, %arg4: memref<6x1xf32, #tpu.memory_space<vmem>>, %arg5: memref<4x2xf32, #tpu.memory_space<vmem>>, %arg6: memref<4x1xf32, #tpu.memory_space<vmem>>, %arg7: memref<1x4x8x256xf32, #tpu.memory_space<vmem>>) attributes {dimension_semantics = [#tpu.dimension_semantics<parallel>, #tpu.dimension_semantics<parallel>], iteration_bounds = array<i64: 2, 1>, scalar_prefetch = 0 : i64, scratch_operands = 0 : i64, tpu.core_type = #tpu.core_type<tc>, window_params = [{transform_indices = @transform_0, window_bounds = array<i64: 1, 4, 8, 256>}, {pipeline_mode = #tpu.pipeline_mode<synchronous>, transform_indices = @transform_1, window_bounds = array<i64: 6, 4>}, {pipeline_mode = #tpu.pipeline_mode<synchronous>, transform_indices = @transform_2, window_bounds = array<i64: 6, 1>}, {pipeline_mode = #tpu.pipeline_mode<synchronous>, transform_indices = @transform_3, window_bounds = array<i64: 4, 2>}, {pipeline_mode = #tpu.pipeline_mode<synchronous>, transform_indices = @transform_4, window_bounds = array<i64: 4, 1>}, {transform_indices = @transform_5, window_bounds = array<i64: 1, 4, 8, 256>}]} {
    %c0 = arith.constant 0 : index
    %c0_0 = arith.constant 0 : index
    %c0_1 = arith.constant 0 : index
    %c0_2 = arith.constant 0 : index
    %0 = vector.load %arg2[%c0, %c0_0, %c0_1, %c0_2] : memref<1x4x8x256xf32, #tpu.memory_space<vmem>>, vector<1x1x8x256xf32>
    %1 = vector.shape_cast %0 : vector<1x1x8x256xf32> to vector<8x256xf32>
    %c0_3 = arith.constant 0 : index
    %c1 = arith.constant 1 : index
    %c0_4 = arith.constant 0 : index
    %c0_5 = arith.constant 0 : index
    %2 = vector.load %arg2[%c0_3, %c1, %c0_4, %c0_5] : memref<1x4x8x256xf32, #tpu.memory_space<vmem>>, vector<1x1x8x256xf32>
    %3 = vector.shape_cast %2 : vector<1x1x8x256xf32> to vector<8x256xf32>
    %c0_6 = arith.constant 0 : index
    %c2 = arith.constant 2 : index
    %c0_7 = arith.constant 0 : index
    %c0_8 = arith.constant 0 : index
    %4 = vector.load %arg2[%c0_6, %c2, %c0_7, %c0_8] : memref<1x4x8x256xf32, #tpu.memory_space<vmem>>, vector<1x1x8x256xf32>
    %5 = vector.shape_cast %4 : vector<1x1x8x256xf32> to vector<8x256xf32>
    %c0_9 = arith.constant 0 : index
    %c3 = arith.constant 3 : index
    %c0_10 = arith.constant 0 : index
    %c0_11 = arith.constant 0 : index
    %6 = vector.load %arg2[%c0_9, %c3, %c0_10, %c0_11] : memref<1x4x8x256xf32, #tpu.memory_space<vmem>>, vector<1x1x8x256xf32>
    %7 = vector.shape_cast %6 : vector<1x1x8x256xf32> to vector<8x256xf32>
    %c0_12 = arith.constant 0 : index
    %c0_13 = arith.constant 0 : index
    %8 = vector.load %arg3[%c0_12, %c0_13] : memref<6x4xf32, #tpu.memory_space<vmem>>, vector<1x1xf32>
    %9 = vector.broadcast %8 : vector<1x1xf32> to vector<8x256xf32>
    %10 = arith.mulf %9, %1 : vector<8x256xf32>
    %c0_14 = arith.constant 0 : index
    %c1_15 = arith.constant 1 : index
    %11 = vector.load %arg3[%c0_14, %c1_15] : memref<6x4xf32, #tpu.memory_space<vmem>>, vector<1x1xf32>
    %12 = vector.broadcast %11 : vector<1x1xf32> to vector<8x256xf32>
    %13 = arith.mulf %12, %3 : vector<8x256xf32>
    %14 = arith.addf %10, %13 : vector<8x256xf32>
    %c0_16 = arith.constant 0 : index
    %c2_17 = arith.constant 2 : index
    %15 = vector.load %arg3[%c0_16, %c2_17] : memref<6x4xf32, #tpu.memory_space<vmem>>, vector<1x1xf32>
    %16 = vector.broadcast %15 : vector<1x1xf32> to vector<8x256xf32>
    %17 = arith.mulf %16, %5 : vector<8x256xf32>
    %18 = arith.addf %14, %17 : vector<8x256xf32>
    %c0_18 = arith.constant 0 : index
    %c3_19 = arith.constant 3 : index
    %19 = vector.load %arg3[%c0_18, %c3_19] : memref<6x4xf32, #tpu.memory_space<vmem>>, vector<1x1xf32>
    %20 = vector.broadcast %19 : vector<1x1xf32> to vector<8x256xf32>
    %21 = arith.mulf %20, %7 : vector<8x256xf32>
    %22 = arith.addf %18, %21 : vector<8x256xf32>
    %c0_20 = arith.constant 0 : index
    %c0_21 = arith.constant 0 : index
    %23 = vector.load %arg4[%c0_20, %c0_21] : memref<6x1xf32, #tpu.memory_space<vmem>>, vector<1x1xf32>
    %24 = vector.broadcast %23 : vector<1x1xf32> to vector<8x256xf32>
    %25 = arith.addf %22, %24 : vector<8x256xf32>
    %c1_22 = arith.constant 1 : index
    %c0_23 = arith.constant 0 : index
    %26 = vector.load %arg3[%c1_22, %c0_23] : memref<6x4xf32, #tpu.memory_space<vmem>>, vector<1x1xf32>
    %27 = vector.broadcast %26 : vector<1x1xf32> to vector<8x256xf32>
    %28 = arith.mulf %27, %1 : vector<8x256xf32>
    %c1_24 = arith.constant 1 : index
    %c1_25 = arith.constant 1 : index
    %29 = vector.load %arg3[%c1_24, %c1_25] : memref<6x4xf32, #tpu.memory_space<vmem>>, vector<1x1xf32>
    %30 = vector.broadcast %29 : vector<1x1xf32> to vector<8x256xf32>
    %31 = arith.mulf %30, %3 : vector<8x256xf32>
    %32 = arith.addf %28, %31 : vector<8x256xf32>
    %c1_26 = arith.constant 1 : index
    %c2_27 = arith.constant 2 : index
    %33 = vector.load %arg3[%c1_26, %c2_27] : memref<6x4xf32, #tpu.memory_space<vmem>>, vector<1x1xf32>
    %34 = vector.broadcast %33 : vector<1x1xf32> to vector<8x256xf32>
    %35 = arith.mulf %34, %5 : vector<8x256xf32>
    %36 = arith.addf %32, %35 : vector<8x256xf32>
    %c1_28 = arith.constant 1 : index
    %c3_29 = arith.constant 3 : index
    %37 = vector.load %arg3[%c1_28, %c3_29] : memref<6x4xf32, #tpu.memory_space<vmem>>, vector<1x1xf32>
    %38 = vector.broadcast %37 : vector<1x1xf32> to vector<8x256xf32>
    %39 = arith.mulf %38, %7 : vector<8x256xf32>
    %40 = arith.addf %36, %39 : vector<8x256xf32>
    %c1_30 = arith.constant 1 : index
    %c0_31 = arith.constant 0 : index
    %41 = vector.load %arg4[%c1_30, %c0_31] : memref<6x1xf32, #tpu.memory_space<vmem>>, vector<1x1xf32>
    %42 = vector.broadcast %41 : vector<1x1xf32> to vector<8x256xf32>
    %43 = arith.addf %40, %42 : vector<8x256xf32>
    %c2_32 = arith.constant 2 : index
    %c0_33 = arith.constant 0 : index
    %44 = vector.load %arg3[%c2_32, %c0_33] : memref<6x4xf32, #tpu.memory_space<vmem>>, vector<1x1xf32>
    %45 = vector.broadcast %44 : vector<1x1xf32> to vector<8x256xf32>
    %46 = arith.mulf %45, %1 : vector<8x256xf32>
    %c2_34 = arith.constant 2 : index
    %c1_35 = arith.constant 1 : index
    %47 = vector.load %arg3[%c2_34, %c1_35] : memref<6x4xf32, #tpu.memory_space<vmem>>, vector<1x1xf32>
    %48 = vector.broadcast %47 : vector<1x1xf32> to vector<8x256xf32>
    %49 = arith.mulf %48, %3 : vector<8x256xf32>
    %50 = arith.addf %46, %49 : vector<8x256xf32>
    %c2_36 = arith.constant 2 : index
    %c2_37 = arith.constant 2 : index
    %51 = vector.load %arg3[%c2_36, %c2_37] : memref<6x4xf32, #tpu.memory_space<vmem>>, vector<1x1xf32>
    %52 = vector.broadcast %51 : vector<1x1xf32> to vector<8x256xf32>
    %53 = arith.mulf %52, %5 : vector<8x256xf32>
    %54 = arith.addf %50, %53 : vector<8x256xf32>
    %c2_38 = arith.constant 2 : index
    %c3_39 = arith.constant 3 : index
    %55 = vector.load %arg3[%c2_38, %c3_39] : memref<6x4xf32, #tpu.memory_space<vmem>>, vector<1x1xf32>
    %56 = vector.broadcast %55 : vector<1x1xf32> to vector<8x256xf32>
    %57 = arith.mulf %56, %7 : vector<8x256xf32>
    %58 = arith.addf %54, %57 : vector<8x256xf32>
    %c2_40 = arith.constant 2 : index
    %c0_41 = arith.constant 0 : index
    %59 = vector.load %arg4[%c2_40, %c0_41] : memref<6x1xf32, #tpu.memory_space<vmem>>, vector<1x1xf32>
    %60 = vector.broadcast %59 : vector<1x1xf32> to vector<8x256xf32>
    %61 = arith.addf %58, %60 : vector<8x256xf32>
    %c3_42 = arith.constant 3 : index
    %c0_43 = arith.constant 0 : index
    %62 = vector.load %arg3[%c3_42, %c0_43] : memref<6x4xf32, #tpu.memory_space<vmem>>, vector<1x1xf32>
    %63 = vector.broadcast %62 : vector<1x1xf32> to vector<8x256xf32>
    %64 = arith.mulf %63, %1 : vector<8x256xf32>
    %c3_44 = arith.constant 3 : index
    %c1_45 = arith.constant 1 : index
    %65 = vector.load %arg3[%c3_44, %c1_45] : memref<6x4xf32, #tpu.memory_space<vmem>>, vector<1x1xf32>
    %66 = vector.broadcast %65 : vector<1x1xf32> to vector<8x256xf32>
    %67 = arith.mulf %66, %3 : vector<8x256xf32>
    %68 = arith.addf %64, %67 : vector<8x256xf32>
    %c3_46 = arith.constant 3 : index
    %c2_47 = arith.constant 2 : index
    %69 = vector.load %arg3[%c3_46, %c2_47] : memref<6x4xf32, #tpu.memory_space<vmem>>, vector<1x1xf32>
    %70 = vector.broadcast %69 : vector<1x1xf32> to vector<8x256xf32>
    %71 = arith.mulf %70, %5 : vector<8x256xf32>
    %72 = arith.addf %68, %71 : vector<8x256xf32>
    %c3_48 = arith.constant 3 : index
    %c3_49 = arith.constant 3 : index
    %73 = vector.load %arg3[%c3_48, %c3_49] : memref<6x4xf32, #tpu.memory_space<vmem>>, vector<1x1xf32>
    %74 = vector.broadcast %73 : vector<1x1xf32> to vector<8x256xf32>
    %75 = arith.mulf %74, %7 : vector<8x256xf32>
    %76 = arith.addf %72, %75 : vector<8x256xf32>
    %c3_50 = arith.constant 3 : index
    %c0_51 = arith.constant 0 : index
    %77 = vector.load %arg4[%c3_50, %c0_51] : memref<6x1xf32, #tpu.memory_space<vmem>>, vector<1x1xf32>
    %78 = vector.broadcast %77 : vector<1x1xf32> to vector<8x256xf32>
    %79 = arith.addf %76, %78 : vector<8x256xf32>
    %c4 = arith.constant 4 : index
    %c0_52 = arith.constant 0 : index
    %80 = vector.load %arg3[%c4, %c0_52] : memref<6x4xf32, #tpu.memory_space<vmem>>, vector<1x1xf32>
    %81 = vector.broadcast %80 : vector<1x1xf32> to vector<8x256xf32>
    %82 = arith.mulf %81, %1 : vector<8x256xf32>
    %c4_53 = arith.constant 4 : index
    %c1_54 = arith.constant 1 : index
    %83 = vector.load %arg3[%c4_53, %c1_54] : memref<6x4xf32, #tpu.memory_space<vmem>>, vector<1x1xf32>
    %84 = vector.broadcast %83 : vector<1x1xf32> to vector<8x256xf32>
    %85 = arith.mulf %84, %3 : vector<8x256xf32>
    %86 = arith.addf %82, %85 : vector<8x256xf32>
    %c4_55 = arith.constant 4 : index
    %c2_56 = arith.constant 2 : index
    %87 = vector.load %arg3[%c4_55, %c2_56] : memref<6x4xf32, #tpu.memory_space<vmem>>, vector<1x1xf32>
    %88 = vector.broadcast %87 : vector<1x1xf32> to vector<8x256xf32>
    %89 = arith.mulf %88, %5 : vector<8x256xf32>
    %90 = arith.addf %86, %89 : vector<8x256xf32>
    %c4_57 = arith.constant 4 : index
    %c3_58 = arith.constant 3 : index
    %91 = vector.load %arg3[%c4_57, %c3_58] : memref<6x4xf32, #tpu.memory_space<vmem>>, vector<1x1xf32>
    %92 = vector.broadcast %91 : vector<1x1xf32> to vector<8x256xf32>
    %93 = arith.mulf %92, %7 : vector<8x256xf32>
    %94 = arith.addf %90, %93 : vector<8x256xf32>
    %c4_59 = arith.constant 4 : index
    %c0_60 = arith.constant 0 : index
    %95 = vector.load %arg4[%c4_59, %c0_60] : memref<6x1xf32, #tpu.memory_space<vmem>>, vector<1x1xf32>
    %96 = vector.broadcast %95 : vector<1x1xf32> to vector<8x256xf32>
    %97 = arith.addf %94, %96 : vector<8x256xf32>
    %c5 = arith.constant 5 : index
    %c0_61 = arith.constant 0 : index
    %98 = vector.load %arg3[%c5, %c0_61] : memref<6x4xf32, #tpu.memory_space<vmem>>, vector<1x1xf32>
    %99 = vector.broadcast %98 : vector<1x1xf32> to vector<8x256xf32>
    %100 = arith.mulf %99, %1 : vector<8x256xf32>
    %c5_62 = arith.constant 5 : index
    %c1_63 = arith.constant 1 : index
    %101 = vector.load %arg3[%c5_62, %c1_63] : memref<6x4xf32, #tpu.memory_space<vmem>>, vector<1x1xf32>
    %102 = vector.broadcast %101 : vector<1x1xf32> to vector<8x256xf32>
    %103 = arith.mulf %102, %3 : vector<8x256xf32>
    %104 = arith.addf %100, %103 : vector<8x256xf32>
    %c5_64 = arith.constant 5 : index
    %c2_65 = arith.constant 2 : index
    %105 = vector.load %arg3[%c5_64, %c2_65] : memref<6x4xf32, #tpu.memory_space<vmem>>, vector<1x1xf32>
    %106 = vector.broadcast %105 : vector<1x1xf32> to vector<8x256xf32>
    %107 = arith.mulf %106, %5 : vector<8x256xf32>
    %108 = arith.addf %104, %107 : vector<8x256xf32>
    %c5_66 = arith.constant 5 : index
    %c3_67 = arith.constant 3 : index
    %109 = vector.load %arg3[%c5_66, %c3_67] : memref<6x4xf32, #tpu.memory_space<vmem>>, vector<1x1xf32>
    %110 = vector.broadcast %109 : vector<1x1xf32> to vector<8x256xf32>
    %111 = arith.mulf %110, %7 : vector<8x256xf32>
    %112 = arith.addf %108, %111 : vector<8x256xf32>
    %c5_68 = arith.constant 5 : index
    %c0_69 = arith.constant 0 : index
    %113 = vector.load %arg4[%c5_68, %c0_69] : memref<6x1xf32, #tpu.memory_space<vmem>>, vector<1x1xf32>
    %114 = vector.broadcast %113 : vector<1x1xf32> to vector<8x256xf32>
    %115 = arith.addf %112, %114 : vector<8x256xf32>
    %cst = arith.constant 0.000000e+00 : f32
    %116 = vector.broadcast %cst : f32 to vector<8x256xf32>
    %cst_70 = arith.constant 0.000000e+00 : f32
    %117 = vector.broadcast %cst_70 : f32 to vector<8x256xf32>
    %118 = vector.extract_strided_slice %61 {offsets = [0, 0], sizes = [1, 256], strides = [1, 1]} : vector<8x256xf32> to vector<1x256xf32>
    %119 = vector.broadcast %118 : vector<1x256xf32> to vector<8x256xf32>
    %120 = arith.mulf %119, %25 : vector<8x256xf32>
    %121 = vector.extract_strided_slice %79 {offsets = [0, 0], sizes = [1, 256], strides = [1, 1]} : vector<8x256xf32> to vector<1x256xf32>
    %122 = vector.broadcast %121 : vector<1x256xf32> to vector<8x256xf32>
    %123 = arith.mulf %122, %43 : vector<8x256xf32>
    %124 = arith.addf %120, %123 : vector<8x256xf32>
    %125 = vector.extract_strided_slice %97 {offsets = [0, 0], sizes = [1, 256], strides = [1, 1]} : vector<8x256xf32> to vector<1x256xf32>
    %126 = vector.broadcast %125 : vector<1x256xf32> to vector<8x256xf32>
    %127 = arith.mulf %126, %124 : vector<8x256xf32>
    %128 = arith.addf %116, %127 : vector<8x256xf32>
    %129 = vector.extract_strided_slice %115 {offsets = [0, 0], sizes = [1, 256], strides = [1, 1]} : vector<8x256xf32> to vector<1x256xf32>
    %130 = vector.broadcast %129 : vector<1x256xf32> to vector<8x256xf32>
    %131 = arith.mulf %130, %124 : vector<8x256xf32>
    %132 = arith.addf %117, %131 : vector<8x256xf32>
    %133 = vector.extract_strided_slice %61 {offsets = [1, 0], sizes = [1, 256], strides = [1, 1]} : vector<8x256xf32> to vector<1x256xf32>
    %134 = vector.broadcast %133 : vector<1x256xf32> to vector<8x256xf32>
    %135 = arith.mulf %134, %25 : vector<8x256xf32>
    %136 = vector.extract_strided_slice %79 {offsets = [1, 0], sizes = [1, 256], strides = [1, 1]} : vector<8x256xf32> to vector<1x256xf32>
    %137 = vector.broadcast %136 : vector<1x256xf32> to vector<8x256xf32>
    %138 = arith.mulf %137, %43 : vector<8x256xf32>
    %139 = arith.addf %135, %138 : vector<8x256xf32>
    %140 = vector.extract_strided_slice %97 {offsets = [1, 0], sizes = [1, 256], strides = [1, 1]} : vector<8x256xf32> to vector<1x256xf32>
    %141 = vector.broadcast %140 : vector<1x256xf32> to vector<8x256xf32>
    %142 = arith.mulf %141, %139 : vector<8x256xf32>
    %143 = arith.addf %128, %142 : vector<8x256xf32>
    %144 = vector.extract_strided_slice %115 {offsets = [1, 0], sizes = [1, 256], strides = [1, 1]} : vector<8x256xf32> to vector<1x256xf32>
    %145 = vector.broadcast %144 : vector<1x256xf32> to vector<8x256xf32>
    %146 = arith.mulf %145, %139 : vector<8x256xf32>
    %147 = arith.addf %132, %146 : vector<8x256xf32>
    %148 = vector.extract_strided_slice %61 {offsets = [2, 0], sizes = [1, 256], strides = [1, 1]} : vector<8x256xf32> to vector<1x256xf32>
    %149 = vector.broadcast %148 : vector<1x256xf32> to vector<8x256xf32>
    %150 = arith.mulf %149, %25 : vector<8x256xf32>
    %151 = vector.extract_strided_slice %79 {offsets = [2, 0], sizes = [1, 256], strides = [1, 1]} : vector<8x256xf32> to vector<1x256xf32>
    %152 = vector.broadcast %151 : vector<1x256xf32> to vector<8x256xf32>
    %153 = arith.mulf %152, %43 : vector<8x256xf32>
    %154 = arith.addf %150, %153 : vector<8x256xf32>
    %155 = vector.extract_strided_slice %97 {offsets = [2, 0], sizes = [1, 256], strides = [1, 1]} : vector<8x256xf32> to vector<1x256xf32>
    %156 = vector.broadcast %155 : vector<1x256xf32> to vector<8x256xf32>
    %157 = arith.mulf %156, %154 : vector<8x256xf32>
    %158 = arith.addf %143, %157 : vector<8x256xf32>
    %159 = vector.extract_strided_slice %115 {offsets = [2, 0], sizes = [1, 256], strides = [1, 1]} : vector<8x256xf32> to vector<1x256xf32>
    %160 = vector.broadcast %159 : vector<1x256xf32> to vector<8x256xf32>
    %161 = arith.mulf %160, %154 : vector<8x256xf32>
    %162 = arith.addf %147, %161 : vector<8x256xf32>
    %163 = vector.extract_strided_slice %61 {offsets = [3, 0], sizes = [1, 256], strides = [1, 1]} : vector<8x256xf32> to vector<1x256xf32>
    %164 = vector.broadcast %163 : vector<1x256xf32> to vector<8x256xf32>
    %165 = arith.mulf %164, %25 : vector<8x256xf32>
    %166 = vector.extract_strided_slice %79 {offsets = [3, 0], sizes = [1, 256], strides = [1, 1]} : vector<8x256xf32> to vector<1x256xf32>
    %167 = vector.broadcast %166 : vector<1x256xf32> to vector<8x256xf32>
    %168 = arith.mulf %167, %43 : vector<8x256xf32>
    %169 = arith.addf %165, %168 : vector<8x256xf32>
    %170 = vector.extract_strided_slice %97 {offsets = [3, 0], sizes = [1, 256], strides = [1, 1]} : vector<8x256xf32> to vector<1x256xf32>
    %171 = vector.broadcast %170 : vector<1x256xf32> to vector<8x256xf32>
    %172 = arith.mulf %171, %169 : vector<8x256xf32>
    %173 = arith.addf %158, %172 : vector<8x256xf32>
    %174 = vector.extract_strided_slice %115 {offsets = [3, 0], sizes = [1, 256], strides = [1, 1]} : vector<8x256xf32> to vector<1x256xf32>
    %175 = vector.broadcast %174 : vector<1x256xf32> to vector<8x256xf32>
    %176 = arith.mulf %175, %169 : vector<8x256xf32>
    %177 = arith.addf %162, %176 : vector<8x256xf32>
    %178 = vector.extract_strided_slice %61 {offsets = [4, 0], sizes = [1, 256], strides = [1, 1]} : vector<8x256xf32> to vector<1x256xf32>
    %179 = vector.broadcast %178 : vector<1x256xf32> to vector<8x256xf32>
    %180 = arith.mulf %179, %25 : vector<8x256xf32>
    %181 = vector.extract_strided_slice %79 {offsets = [4, 0], sizes = [1, 256], strides = [1, 1]} : vector<8x256xf32> to vector<1x256xf32>
    %182 = vector.broadcast %181 : vector<1x256xf32> to vector<8x256xf32>
    %183 = arith.mulf %182, %43 : vector<8x256xf32>
    %184 = arith.addf %180, %183 : vector<8x256xf32>
    %185 = vector.extract_strided_slice %97 {offsets = [4, 0], sizes = [1, 256], strides = [1, 1]} : vector<8x256xf32> to vector<1x256xf32>
    %186 = vector.broadcast %185 : vector<1x256xf32> to vector<8x256xf32>
    %187 = arith.mulf %186, %184 : vector<8x256xf32>
    %188 = arith.addf %173, %187 : vector<8x256xf32>
    %189 = vector.extract_strided_slice %115 {offsets = [4, 0], sizes = [1, 256], strides = [1, 1]} : vector<8x256xf32> to vector<1x256xf32>
    %190 = vector.broadcast %189 : vector<1x256xf32> to vector<8x256xf32>
    %191 = arith.mulf %190, %184 : vector<8x256xf32>
    %192 = arith.addf %177, %191 : vector<8x256xf32>
    %193 = vector.extract_strided_slice %61 {offsets = [5, 0], sizes = [1, 256], strides = [1, 1]} : vector<8x256xf32> to vector<1x256xf32>
    %194 = vector.broadcast %193 : vector<1x256xf32> to vector<8x256xf32>
    %195 = arith.mulf %194, %25 : vector<8x256xf32>
    %196 = vector.extract_strided_slice %79 {offsets = [5, 0], sizes = [1, 256], strides = [1, 1]} : vector<8x256xf32> to vector<1x256xf32>
    %197 = vector.broadcast %196 : vector<1x256xf32> to vector<8x256xf32>
    %198 = arith.mulf %197, %43 : vector<8x256xf32>
    %199 = arith.addf %195, %198 : vector<8x256xf32>
    %200 = vector.extract_strided_slice %97 {offsets = [5, 0], sizes = [1, 256], strides = [1, 1]} : vector<8x256xf32> to vector<1x256xf32>
    %201 = vector.broadcast %200 : vector<1x256xf32> to vector<8x256xf32>
    %202 = arith.mulf %201, %199 : vector<8x256xf32>
    %203 = arith.addf %188, %202 : vector<8x256xf32>
    %204 = vector.extract_strided_slice %115 {offsets = [5, 0], sizes = [1, 256], strides = [1, 1]} : vector<8x256xf32> to vector<1x256xf32>
    %205 = vector.broadcast %204 : vector<1x256xf32> to vector<8x256xf32>
    %206 = arith.mulf %205, %199 : vector<8x256xf32>
    %207 = arith.addf %192, %206 : vector<8x256xf32>
    %208 = vector.extract_strided_slice %61 {offsets = [6, 0], sizes = [1, 256], strides = [1, 1]} : vector<8x256xf32> to vector<1x256xf32>
    %209 = vector.broadcast %208 : vector<1x256xf32> to vector<8x256xf32>
    %210 = arith.mulf %209, %25 : vector<8x256xf32>
    %211 = vector.extract_strided_slice %79 {offsets = [6, 0], sizes = [1, 256], strides = [1, 1]} : vector<8x256xf32> to vector<1x256xf32>
    %212 = vector.broadcast %211 : vector<1x256xf32> to vector<8x256xf32>
    %213 = arith.mulf %212, %43 : vector<8x256xf32>
    %214 = arith.addf %210, %213 : vector<8x256xf32>
    %215 = vector.extract_strided_slice %97 {offsets = [6, 0], sizes = [1, 256], strides = [1, 1]} : vector<8x256xf32> to vector<1x256xf32>
    %216 = vector.broadcast %215 : vector<1x256xf32> to vector<8x256xf32>
    %217 = arith.mulf %216, %214 : vector<8x256xf32>
    %218 = arith.addf %203, %217 : vector<8x256xf32>
    %219 = vector.extract_strided_slice %115 {offsets = [6, 0], sizes = [1, 256], strides = [1, 1]} : vector<8x256xf32> to vector<1x256xf32>
    %220 = vector.broadcast %219 : vector<1x256xf32> to vector<8x256xf32>
    %221 = arith.mulf %220, %214 : vector<8x256xf32>
    %222 = arith.addf %207, %221 : vector<8x256xf32>
    %223 = vector.extract_strided_slice %61 {offsets = [7, 0], sizes = [1, 256], strides = [1, 1]} : vector<8x256xf32> to vector<1x256xf32>
    %224 = vector.broadcast %223 : vector<1x256xf32> to vector<8x256xf32>
    %225 = arith.mulf %224, %25 : vector<8x256xf32>
    %226 = vector.extract_strided_slice %79 {offsets = [7, 0], sizes = [1, 256], strides = [1, 1]} : vector<8x256xf32> to vector<1x256xf32>
    %227 = vector.broadcast %226 : vector<1x256xf32> to vector<8x256xf32>
    %228 = arith.mulf %227, %43 : vector<8x256xf32>
    %229 = arith.addf %225, %228 : vector<8x256xf32>
    %230 = vector.extract_strided_slice %97 {offsets = [7, 0], sizes = [1, 256], strides = [1, 1]} : vector<8x256xf32> to vector<1x256xf32>
    %231 = vector.broadcast %230 : vector<1x256xf32> to vector<8x256xf32>
    %232 = arith.mulf %231, %229 : vector<8x256xf32>
    %233 = arith.addf %218, %232 : vector<8x256xf32>
    %234 = vector.extract_strided_slice %115 {offsets = [7, 0], sizes = [1, 256], strides = [1, 1]} : vector<8x256xf32> to vector<1x256xf32>
    %235 = vector.broadcast %234 : vector<1x256xf32> to vector<8x256xf32>
    %236 = arith.mulf %235, %229 : vector<8x256xf32>
    %237 = arith.addf %222, %236 : vector<8x256xf32>
    %c0_71 = arith.constant 0 : index
    %c0_72 = arith.constant 0 : index
    %238 = vector.load %arg6[%c0_71, %c0_72] : memref<4x1xf32, #tpu.memory_space<vmem>>, vector<1x1xf32>
    %239 = vector.broadcast %238 : vector<1x1xf32> to vector<8x256xf32>
    %240 = arith.addf %1, %239 : vector<8x256xf32>
    %c0_73 = arith.constant 0 : index
    %c0_74 = arith.constant 0 : index
    %241 = vector.load %arg5[%c0_73, %c0_74] : memref<4x2xf32, #tpu.memory_space<vmem>>, vector<1x1xf32>
    %242 = vector.broadcast %241 : vector<1x1xf32> to vector<8x256xf32>
    %243 = arith.mulf %242, %233 : vector<8x256xf32>
    %244 = arith.addf %240, %243 : vector<8x256xf32>
    %c0_75 = arith.constant 0 : index
    %c1_76 = arith.constant 1 : index
    %245 = vector.load %arg5[%c0_75, %c1_76] : memref<4x2xf32, #tpu.memory_space<vmem>>, vector<1x1xf32>
    %246 = vector.broadcast %245 : vector<1x1xf32> to vector<8x256xf32>
    %247 = arith.mulf %246, %237 : vector<8x256xf32>
    %248 = arith.addf %244, %247 : vector<8x256xf32>
    %c0_77 = arith.constant 0 : index
    %c0_78 = arith.constant 0 : index
    %c0_79 = arith.constant 0 : index
    %c0_80 = arith.constant 0 : index
    %249 = vector.load %arg7[%c0_77, %c0_78, %c0_79, %c0_80] : memref<1x4x8x256xf32, #tpu.memory_space<vmem>>, vector<1x1x8x256xf32>
    %250 = vector.shape_cast %249 : vector<1x1x8x256xf32> to vector<8x256xf32>
    %251 = vector.shape_cast %248 : vector<8x256xf32> to vector<1x1x8x256xf32>
    tpu.vector_store %arg7[%c0_77, %c0_78, %c0_79, %c0_80], %251 {strides = array<i32>} : memref<1x4x8x256xf32, #tpu.memory_space<vmem>>, vector<1x1x8x256xf32>,
    %c1_81 = arith.constant 1 : index
    %c0_82 = arith.constant 0 : index
    %252 = vector.load %arg6[%c1_81, %c0_82] : memref<4x1xf32, #tpu.memory_space<vmem>>, vector<1x1xf32>
    %253 = vector.broadcast %252 : vector<1x1xf32> to vector<8x256xf32>
    %254 = arith.addf %3, %253 : vector<8x256xf32>
    %c1_83 = arith.constant 1 : index
    %c0_84 = arith.constant 0 : index
    %255 = vector.load %arg5[%c1_83, %c0_84] : memref<4x2xf32, #tpu.memory_space<vmem>>, vector<1x1xf32>
    %256 = vector.broadcast %255 : vector<1x1xf32> to vector<8x256xf32>
    %257 = arith.mulf %256, %233 : vector<8x256xf32>
    %258 = arith.addf %254, %257 : vector<8x256xf32>
    %c1_85 = arith.constant 1 : index
    %c1_86 = arith.constant 1 : index
    %259 = vector.load %arg5[%c1_85, %c1_86] : memref<4x2xf32, #tpu.memory_space<vmem>>, vector<1x1xf32>
    %260 = vector.broadcast %259 : vector<1x1xf32> to vector<8x256xf32>
    %261 = arith.mulf %260, %237 : vector<8x256xf32>
    %262 = arith.addf %258, %261 : vector<8x256xf32>
    %c0_87 = arith.constant 0 : index
    %c1_88 = arith.constant 1 : index
    %c0_89 = arith.constant 0 : index
    %c0_90 = arith.constant 0 : index
    %263 = vector.load %arg7[%c0_87, %c1_88, %c0_89, %c0_90] : memref<1x4x8x256xf32, #tpu.memory_space<vmem>>, vector<1x1x8x256xf32>
    %264 = vector.shape_cast %263 : vector<1x1x8x256xf32> to vector<8x256xf32>
    %265 = vector.shape_cast %262 : vector<8x256xf32> to vector<1x1x8x256xf32>
    tpu.vector_store %arg7[%c0_87, %c1_88, %c0_89, %c0_90], %265 {strides = array<i32>} : memref<1x4x8x256xf32, #tpu.memory_space<vmem>>, vector<1x1x8x256xf32>,
    %c2_91 = arith.constant 2 : index
    %c0_92 = arith.constant 0 : index
    %266 = vector.load %arg6[%c2_91, %c0_92] : memref<4x1xf32, #tpu.memory_space<vmem>>, vector<1x1xf32>
    %267 = vector.broadcast %266 : vector<1x1xf32> to vector<8x256xf32>
    %268 = arith.addf %5, %267 : vector<8x256xf32>
    %c2_93 = arith.constant 2 : index
    %c0_94 = arith.constant 0 : index
    %269 = vector.load %arg5[%c2_93, %c0_94] : memref<4x2xf32, #tpu.memory_space<vmem>>, vector<1x1xf32>
    %270 = vector.broadcast %269 : vector<1x1xf32> to vector<8x256xf32>
    %271 = arith.mulf %270, %233 : vector<8x256xf32>
    %272 = arith.addf %268, %271 : vector<8x256xf32>
    %c2_95 = arith.constant 2 : index
    %c1_96 = arith.constant 1 : index
    %273 = vector.load %arg5[%c2_95, %c1_96] : memref<4x2xf32, #tpu.memory_space<vmem>>, vector<1x1xf32>
    %274 = vector.broadcast %273 : vector<1x1xf32> to vector<8x256xf32>
    %275 = arith.mulf %274, %237 : vector<8x256xf32>
    %276 = arith.addf %272, %275 : vector<8x256xf32>
    %c0_97 = arith.constant 0 : index
    %c2_98 = arith.constant 2 : index
    %c0_99 = arith.constant 0 : index
    %c0_100 = arith.constant 0 : index
    %277 = vector.load %arg7[%c0_97, %c2_98, %c0_99, %c0_100] : memref<1x4x8x256xf32, #tpu.memory_space<vmem>>, vector<1x1x8x256xf32>
    %278 = vector.shape_cast %277 : vector<1x1x8x256xf32> to vector<8x256xf32>
    %279 = vector.shape_cast %276 : vector<8x256xf32> to vector<1x1x8x256xf32>
    tpu.vector_store %arg7[%c0_97, %c2_98, %c0_99, %c0_100], %279 {strides = array<i32>} : memref<1x4x8x256xf32, #tpu.memory_space<vmem>>, vector<1x1x8x256xf32>,
    %c3_101 = arith.constant 3 : index
    %c0_102 = arith.constant 0 : index
    %280 = vector.load %arg6[%c3_101, %c0_102] : memref<4x1xf32, #tpu.memory_space<vmem>>, vector<1x1xf32>
    %281 = vector.broadcast %280 : vector<1x1xf32> to vector<8x256xf32>
    %282 = arith.addf %7, %281 : vector<8x256xf32>
    %c3_103 = arith.constant 3 : index
    %c0_104 = arith.constant 0 : index
    %283 = vector.load %arg5[%c3_103, %c0_104] : memref<4x2xf32, #tpu.memory_space<vmem>>, vector<1x1xf32>
    %284 = vector.broadcast %283 : vector<1x1xf32> to vector<8x256xf32>
    %285 = arith.mulf %284, %233 : vector<8x256xf32>
    %286 = arith.addf %282, %285 : vector<8x256xf32>
    %c3_105 = arith.constant 3 : index
    %c1_106 = arith.constant 1 : index
    %287 = vector.load %arg5[%c3_105, %c1_106] : memref<4x2xf32, #tpu.memory_space<vmem>>, vector<1x1xf32>
    %288 = vector.broadcast %287 : vector<1x1xf32> to vector<8x256xf32>
    %289 = arith.mulf %288, %237 : vector<8x256xf32>
    %290 = arith.addf %286, %289 : vector<8x256xf32>
    %c0_107 = arith.constant 0 : index
    %c3_108 = arith.constant 3 : index
    %c0_109 = arith.constant 0 : index
    %c0_110 = arith.constant 0 : index
    %291 = vector.load %arg7[%c0_107, %c3_108, %c0_109, %c0_110] : memref<1x4x8x256xf32, #tpu.memory_space<vmem>>, vector<1x1x8x256xf32>
    %292 = vector.shape_cast %291 : vector<1x1x8x256xf32> to vector<8x256xf32>
    %293 = vector.shape_cast %290 : vector<8x256xf32> to vector<1x1x8x256xf32>
    tpu.vector_store %arg7[%c0_107, %c3_108, %c0_109, %c0_110], %293 {strides = array<i32>} : memref<1x4x8x256xf32, #tpu.memory_space<vmem>>, vector<1x1x8x256xf32>,
    return
  }
  func.func @transform_0(%arg0: i32, %arg1: i32) -> (i32, i32, i32, i32) {
    %c0_i32 = arith.constant 0 : i32
    %c0_i32_0 = arith.constant 0 : i32
    %c0_i32_1 = arith.constant 0 : i32
    return %arg0, %c0_i32, %c0_i32_0, %arg1 : i32, i32, i32, i32
  }
  func.func @transform_1(%arg0: i32, %arg1: i32) -> (i32, i32) {
    %c0_i32 = arith.constant 0 : i32
    %c0_i32_0 = arith.constant 0 : i32
    %c0_i32_1 = arith.constant 0 : i32
    return %c0_i32, %c0_i32_0 : i32, i32
  }
  func.func @transform_2(%arg0: i32, %arg1: i32) -> (i32, i32) {
    %c0_i32 = arith.constant 0 : i32
    %c0_i32_0 = arith.constant 0 : i32
    %c0_i32_1 = arith.constant 0 : i32
    return %c0_i32, %c0_i32_0 : i32, i32
  }
  func.func @transform_3(%arg0: i32, %arg1: i32) -> (i32, i32) {
    %c0_i32 = arith.constant 0 : i32
    %c0_i32_0 = arith.constant 0 : i32
    %c0_i32_1 = arith.constant 0 : i32
    return %c0_i32, %c0_i32_0 : i32, i32
  }
  func.func @transform_4(%arg0: i32, %arg1: i32) -> (i32, i32) {
    %c0_i32 = arith.constant 0 : i32
    %c0_i32_0 = arith.constant 0 : i32
    %c0_i32_1 = arith.constant 0 : i32
    return %c0_i32, %c0_i32_0 : i32, i32
  }
  func.func @transform_5(%arg0: i32, %arg1: i32) -> (i32, i32, i32, i32) {
    %c0_i32 = arith.constant 0 : i32
    %c0_i32_0 = arith.constant 0 : i32
    %c0_i32_1 = arith.constant 0 : i32
    return %arg0, %c0_i32, %c0_i32_0, %arg1 : i32, i32, i32, i32
  }
}

</mosaic_0001>

<llo_original>
// kernel: tpu_custom_call.1
$region0: #{tpu_custom_call.1}
  #allocation0 [shape = 'u32[]', space=smem, size = 0x4, offset = 0x4, fixed_abs, tag = 'smem constant byte address 0x4 - core index']
  #allocation1 [shape = 'u32[144,128]{1,0:T(1,128)}', space=vmem, size = 0x12000, scoped, tag = 'internal scratch']
  %s0 = inlined_call_operand.hbm [shape: f32[2,4,8,256], index: 0, kind: input, shape index: {}]
  %s1 = inlined_call_operand.vmem [shape: f32[6,4], index: 1, kind: input, shape index: {}]
  %s2 = inlined_call_operand.vmem [shape: f32[6,1], index: 2, kind: input, shape index: {}]
  %s3 = inlined_call_operand.vmem [shape: f32[4,2], index: 3, kind: input, shape index: {}]
  %s4 = inlined_call_operand.vmem [shape: f32[4,1], index: 4, kind: input, shape index: {}]
  %s5 = inlined_call_operand.hbm [shape: f32[2,4,8,256], index: 5, kind: output, shape index: {}]
  %s6 = sld [smem:[#allocation0]]
  $region57: #{tpu_custom_call.1} parent=0
    _
  %s8 = ssub.s32 1, %s6
  %s9 = scalar_select 0, %s8, %s6
  $region1: #{tpu_custom_call.1} parent=0
    #allocation2 [shape = 'u8[65536]{0}', space=vmem, size = 0x10000, scoped, tag = 'input window, operand 0']
    #allocation3 [shape = 's32[2]{0}', space=sflag, size = 0x8, scoped, tag = 'scoped memory for tpu_custom_call.1']
    #allocation4 [shape = 's32[2]{0}', space=sflag, size = 0x8, scoped, tag = 'scoped memory for tpu_custom_call.1']
    #allocation5 [shape = 'u8[65536]{0}', space=vmem, size = 0x10000, scoped, tag = 'output window, operand 0']
    %10 = vsyncpa [#allocation3], 0
    %s11 = scalar_lea.sflag [#allocation3], 1
    %12 = vsyncpa %s11, 0
    %13 = vsyncpa [#allocation4], 0
    %s14 = scalar_lea.sflag [#allocation4], 1
    %15 = vsyncpa %s14, 0
    loop: start=0, step=1, limit=4
    $region2: #{tpu_custom_call.1} parent=1 // loop_pre_header
      _
    $region3: #{tpu_custom_call.1} parent=1 // loop_header
      %s17 = sphi 0, %s21
      %p18 = scmp.ge.s32.totalorder %s17, 4
      %s24 = sphi 0, %s36
      %s25 = sphi 0, %s32
      %s26 = sphi 0, %s24
      %s27 = sphi 0, %s25
      %s28 = sphi 0, %s26
      %s29 = sphi 0, %s27
      %s41 = sphi 0, %s43
      %s44 = sphi 0, %s41
      %s45 = sphi 0, %s44
      %s61 = sphi 0, %s45
      %s65 = sphi 0, %s65
      %s67 = sphi 0, %s65
      %s68 = sphi 0, %s67
      %s82 = sphi 0, %s68
      %s86 = sphi 0, %s86
      %s88 = sphi 0, %s86
      %s89 = sphi 0, %s88
      %s103 = sphi 0, %s89
      %s107 = sphi 0, %s107
      %s109 = sphi 0, %s107
      %s110 = sphi 0, %s109
      %s124 = sphi 0, %s110
      %s128 = sphi 0, %s128
      %s130 = sphi 0, %s128
      %s131 = sphi 0, %s130
      %s145 = sphi 0, %s131
      %s153 = sphi 0, %s155
      %s156 = sphi 0, %s153
      %s157 = sphi 0, %s156
      %s173 = sphi 0, %s157
    $region4: #{tpu_custom_call.1} parent=1 // loop_header_branch
      %20 = sbr.rel (%p18) target = $region8
    $region5: #{tpu_custom_call.1} parent=1 // loop_body
      %s22 = ssub.s32 %s17, 1
      %s23 = ssub.s32 %s17, 2
      %s30 = sadd.s32 1, %s25
      %p31 = scmp.ge.s32.totalorder %s30, 1
      %s32 = scalar_select %p31, 0, %s30
      %s33 = sadd.s32 1, %s24
      %s34 = scalar_select %p31, %s33, %s24
      %p35 = scmp.ge.s32.totalorder %s34, 2
      %s36 = scalar_select %p35, 0, %s34
      %s37 = ssub.s32 %s24, %s36
      %s38 = ssub.s32 %s25, %s32
      %s39 = sor.u32 %s37, %s38
      %p40 = scmp.eq.s32.totalorder %s39, 0
      %s42 = sadd.s32 %s41, 1
      %s43 = scalar_select %p40, %s41, %s42
      %p46 = pneg %p40
      %p47 = scmp.eq.s32.totalorder %s17, 1
      %p48 = por %p46, %p47
      %p49 = scmp.ne.s32.totalorder %s41, %s44
      %p50 = scmp.eq.s32.totalorder %s17, 0
      %p51 = por %p49, %p50
      %p52 = scmp.ne.s32.totalorder %s41, %s44
      %p53 = scmp.eq.s32.totalorder %s22, 1
      %p54 = por %p52, %p53
      %p55 = scmp.ne.s32.totalorder %s44, %s45
      %p56 = scmp.eq.s32.totalorder %s22, 0
      %p57 = por %p55, %p56
      %p58 = scmp.ne.s32.totalorder %s44, %s45
      %p59 = scmp.eq.s32.totalorder %s23, 1
      %p60 = por %p58, %p59
      %p62 = scmp.ne.s32.totalorder %s45, %s61
      %p63 = scmp.eq.s32.totalorder %s23, 0
      %p64 = por %p62, %p63
      %s66 = sadd.s32 %s65, 1
      %p69 = scmp.eq.s32.totalorder %s17, 1
      %p70 = scmp.ne.s32.totalorder %s65, %s67
      %p71 = scmp.eq.s32.totalorder %s17, 0
      %p72 = por %p70, %p71
      %p73 = scmp.ne.s32.totalorder %s65, %s67
      %p74 = scmp.eq.s32.totalorder %s22, 1
      %p75 = por %p73, %p74
      %p76 = scmp.ne.s32.totalorder %s67, %s68
      %p77 = scmp.eq.s32.totalorder %s22, 0
      %p78 = por %p76, %p77
      %p79 = scmp.ne.s32.totalorder %s67, %s68
      %p80 = scmp.eq.s32.totalorder %s23, 1
      %p81 = por %p79, %p80
      %p83 = scmp.ne.s32.totalorder %s68, %s82
      %p84 = scmp.eq.s32.totalorder %s23, 0
      %p85 = por %p83, %p84
      %s87 = sadd.s32 %s86, 1
      %p90 = scmp.eq.s32.totalorder %s17, 1
      %p91 = scmp.ne.s32.totalorder %s86, %s88
      %p92 = scmp.eq.s32.totalorder %s17, 0
      %p93 = por %p91, %p92
      %p94 = scmp.ne.s32.totalorder %s86, %s88
      %p95 = scmp.eq.s32.totalorder %s22, 1
      %p96 = por %p94, %p95
      %p97 = scmp.ne.s32.totalorder %s88, %s89
      %p98 = scmp.eq.s32.totalorder %s22, 0
      %p99 = por %p97, %p98
      %p100 = scmp.ne.s32.totalorder %s88, %s89
      %p101 = scmp.eq.s32.totalorder %s23, 1
      %p102 = por %p100, %p101
      %p104 = scmp.ne.s32.totalorder %s89, %s103
      %p105 = scmp.eq.s32.totalorder %s23, 0
      %p106 = por %p104, %p105
      %s108 = sadd.s32 %s107, 1
      %p111 = scmp.eq.s32.totalorder %s17, 1
      %p112 = scmp.ne.s32.totalorder %s107, %s109
      %p113 = scmp.eq.s32.totalorder %s17, 0
      %p114 = por %p112, %p113
      %p115 = scmp.ne.s32.totalorder %s107, %s109
      %p116 = scmp.eq.s32.totalorder %s22, 1
      %p117 = por %p115, %p116
      %p118 = scmp.ne.s32.totalorder %s109, %s110
      %p119 = scmp.eq.s32.totalorder %s22, 0
      %p120 = por %p118, %p119
      %p121 = scmp.ne.s32.totalorder %s109, %s110
      %p122 = scmp.eq.s32.totalorder %s23, 1
      %p123 = por %p121, %p122
      %p125 = scmp.ne.s32.totalorder %s110, %s124
      %p126 = scmp.eq.s32.totalorder %s23, 0
      %p127 = por %p125, %p126
      %s129 = sadd.s32 %s128, 1
      %p132 = scmp.eq.s32.totalorder %s17, 1
      %p133 = scmp.ne.s32.totalorder %s128, %s130
      %p134 = scmp.eq.s32.totalorder %s17, 0
      %p135 = por %p133, %p134
      %p136 = scmp.ne.s32.totalorder %s128, %s130
      %p137 = scmp.eq.s32.totalorder %s22, 1
      %p138 = por %p136, %p137
      %p139 = scmp.ne.s32.totalorder %s130, %s131
      %p140 = scmp.eq.s32.totalorder %s22, 0
      %p141 = por %p139, %p140
      %p142 = scmp.ne.s32.totalorder %s130, %s131
      %p143 = scmp.eq.s32.totalorder %s23, 1
      %p144 = por %p142, %p143
      %p146 = scmp.ne.s32.totalorder %s131, %s145
      %p147 = scmp.eq.s32.totalorder %s23, 0
      %p148 = por %p146, %p147
      %s149 = ssub.s32 %s24, %s36
      %s150 = ssub.s32 %s25, %s32
      %s151 = sor.u32 %s149, %s150
      %p152 = scmp.eq.s32.totalorder %s151, 0
      %s154 = sadd.s32 %s153, 1
      %s155 = scalar_select %p152, %s153, %s154
      %p158 = pneg %p152
      %p159 = scmp.eq.s32.totalorder %s17, 1
      %p160 = por %p158, %p159
      %p161 = scmp.ne.s32.totalorder %s153, %s156
      %p162 = scmp.eq.s32.totalorder %s17, 0
      %p163 = por %p161, %p162
      %p164 = scmp.ne.s32.totalorder %s153, %s156
      %p165 = scmp.eq.s32.totalorder %s22, 1
      %p166 = por %p164, %p165
      %p167 = scmp.ne.s32.totalorder %s156, %s157
      %p168 = scmp.eq.s32.totalorder %s22, 0
      %p169 = por %p167, %p168
      %p170 = scmp.ne.s32.totalorder %s156, %s157
      %p171 = scmp.eq.s32.totalorder %s23, 1
      %p172 = por %p170, %p171
      %p174 = scmp.ne.s32.totalorder %s157, %s173
      %p175 = scmp.eq.s32.totalorder %s23, 0
      %p176 = por %p174, %p175
      %p177 = scmp.le.s32.totalorder 1, %s17
      %p178 = scmp.lt.s32.totalorder %s17, 3
      %p179 = pnand %p177, %p178
      %p180 = pneg %p179
      // Predicated region
      $region9: #{tpu_custom_call.1} parent=5 // pred_check
        _
      $region10: #{tpu_custom_call.1} parent=5 // pred_check_branch
        %182 = sbr.rel (%p179) target = $region12
      $region11: #{tpu_custom_call.1} parent=5 // pred_region
        %s183 = ssub.s32 %s17, 1
        // Predicated region
        $region13: #{tpu_custom_call.1} parent=11 // pred_check
          %p184 = pneg %p78
        $region14: #{tpu_custom_call.1} parent=11 // pred_check_branch
          %186 = sbr.rel (%p184) target = $region16
        $region15: #{tpu_custom_call.1} parent=11 // pred_region
          _
        $region16: #{tpu_custom_call.1} parent=11 // pred_fallthru
          _
        // Predicated region
        $region17: #{tpu_custom_call.1} parent=11 // pred_check
          %p187 = pneg %p99
        $region18: #{tpu_custom_call.1} parent=11 // pred_check_branch
          %189 = sbr.rel (%p187) target = $region20
        $region19: #{tpu_custom_call.1} parent=11 // pred_region
          _
        $region20: #{tpu_custom_call.1} parent=11 // pred_fallthru
          _
        // Predicated region
        $region21: #{tpu_custom_call.1} parent=11 // pred_check
          %p190 = pneg %p120
        $region22: #{tpu_custom_call.1} parent=11 // pred_check_branch
          %192 = sbr.rel (%p190) target = $region24
        $region23: #{tpu_custom_call.1} parent=11 // pred_region
          _
        $region24: #{tpu_custom_call.1} parent=11 // pred_fallthru
          _
        // Predicated region
        $region25: #{tpu_custom_call.1} parent=11 // pred_check
          %p193 = pneg %p141
        $region26: #{tpu_custom_call.1} parent=11 // pred_check_branch
          %195 = sbr.rel (%p193) target = $region28
        $region27: #{tpu_custom_call.1} parent=11 // pred_region
          _
        $region28: #{tpu_custom_call.1} parent=11 // pred_fallthru
          _
      $region12: #{tpu_custom_call.1} parent=5 // pred_fallthru
        _
      %p196 = scmp.lt.s32.totalorder %s17, 2
      // Predicated region
      $region29: #{tpu_custom_call.1} parent=5 // pred_check
        %p197 = pneg %p196
      $region30: #{tpu_custom_call.1} parent=5 // pred_check_branch
        %199 = sbr.rel (%p197) target = $region32
      $region31: #{tpu_custom_call.1} parent=5 // pred_region
        // Predicated region
        $region33: #{tpu_custom_call.1} parent=31 // pred_check
          %p200 = pneg %p51
        $region34: #{tpu_custom_call.1} parent=31 // pred_check_branch
          %202 = sbr.rel (%p200) target = $region36
        $region35: #{tpu_custom_call.1} parent=31 // pred_region
          %s203 = sand.u32 %s41, 1
          %s204 = scalar_lea.sflag [#allocation3], %s203
          %s205 = sand.u32 %s41, 1
          %s206 = smul.addr %s205, 64
          %s207 = scalar_lea.vmem [#allocation2], %s206
          %s208 = smul.u32 2, %s25
          %s210 = ssub.s32 1024, 1024
          %211 = vsyncadd %s204, %s210
          %s212 = smul.addr %s24, 8
          %s213 = sadd.s32 %s208, %s212
          %s214 = smul.addr %s213, 128
          %s215 = scalar_lea.hbm %s0, %s214
          %s216 = sshll.u32 %s207, 4
          %s217 = int_to_ptr.vmem [resolvable:$true] %s216
          %222 = dma.hbm_to_vmem [thread:$0]  %s215, 1024, %s217, %s204, 256, 256, 16
        $region36: #{tpu_custom_call.1} parent=31 // pred_fallthru
          _
      $region32: #{tpu_custom_call.1} parent=5 // pred_fallthru
        _
      %p223 = scmp.le.s32.totalorder 1, %s17
      %p224 = scmp.lt.s32.totalorder %s17, 3
      %p225 = pnand %p223, %p224
      %p226 = pneg %p225
      // Predicated region
      $region37: #{tpu_custom_call.1} parent=5 // pred_check
        _
      $region38: #{tpu_custom_call.1} parent=5 // pred_check_branch
        %228 = sbr.rel (%p225) target = $region40
      $region39: #{tpu_custom_call.1} parent=5 // pred_region
        %s229 = ssub.s32 %s17, 1
        %s230 = sand.u32 %s44, 1
        %s231 = scalar_lea.sflag [#allocation3], %s230
        %s232 = sand.u32 %s44, 1
        %s233 = smul.addr %s232, 64
        %s234 = scalar_lea.vmem [#allocation2], %s233
        // Predicated region
        $region41: #{tpu_custom_call.1} parent=39 // pred_check
          %p235 = pneg %p57
        $region42: #{tpu_custom_call.1} parent=39 // pred_check_branch
          %237 = sbr.rel (%p235) target = $region44
        $region43: #{tpu_custom_call.1} parent=39 // pred_region
          %238 = dma.done %s231, 1024
        $region44: #{tpu_custom_call.1} parent=39 // pred_fallthru
          _
        %s239 = sand.u32 %s44, 1
        %s240 = scalar_lea.sflag [#allocation3], %s239
        %s241 = sand.u32 %s44, 1
        %s242 = smul.addr %s241, 64
        %s243 = scalar_lea.vmem [#allocation2], %s242
        %p244 = pneg %p57
        %p245 = pneg %p54
        %p246 = pneg %p78
        %p247 = pneg %p75
        %p248 = pneg %p99
        %p249 = pneg %p96
        %p250 = pneg %p120
        %p251 = pneg %p117
        %p252 = pneg %p141
        %p253 = pneg %p138
        %p254 = pneg %p169
        %p255 = pneg %p166
        %s256 = sand.u32 %s156, 1
        %s257 = scalar_lea.sflag [#allocation4], %s256
        %s258 = sand.u32 %s156, 1
        %s259 = smul.addr %s258, 64
        %s260 = scalar_lea.vmem [#allocation5], %s259
        %s261 = smul.u32 2, %s27
        %s262 = smul.u32 2, %s27
        %v263 = vld [vmem:[%s234] sm:$0xff]
        %v264 = vld [vmem:[%s234 + $0x8] sm:$0xff]
        %s265 = scalar_lea.vmem %s234, 16 [#allocation2]
        %v266 = vld [vmem:[%s265] sm:$0xff]
        %v267 = vld [vmem:[%s265 + $0x8] sm:$0xff]
        %s268 = scalar_lea.vmem %s234, 32 [#allocation2]
        %v269 = vld [vmem:[%s268] sm:$0xff]
        %v270 = vld [vmem:[%s268 + $0x8] sm:$0xff]
        %s271 = scalar_lea.vmem %s234, 48 [#allocation2]
        %v272 = vld [vmem:[%s271] sm:$0xff]
        %v273 = vld [vmem:[%s271 + $0x8] sm:$0xff]
        %v274 = vld [vmem:[%s1] sm:$0x1]
        %s276 = vtos %v274
        %v277 = vstv %s276
        %v279 = vmul.f32 %v277, %v263
        %v280 = vmul.f32 %v277, %v264
        %281 = vrot.lane.b32.xlu0 %v274, 127
        %v282 = vpop.permute.xlu0 %281
        %s283 = vtos %v282
        %v284 = vstv %s283
        %v286 = vmul.f32 %v284, %v266
        %v287 = vmul.f32 %v284, %v267
        %v288 = vadd.f32 %v279, %v286
        %v289 = vadd.f32 %v280, %v287
        %290 = vrot.lane.b32.xlu0 %v274, 126
        %v291 = vpop.permute.xlu0 %290
        %s292 = vtos %v291
        %v293 = vstv %s292
        %v295 = vmul.f32 %v293, %v269
        %v296 = vmul.f32 %v293, %v270
        %v297 = vadd.f32 %v288, %v295
        %v298 = vadd.f32 %v289, %v296
        %299 = vrot.lane.b32.xlu0 %v274, 125
        %v300 = vpop.permute.xlu0 %299
        %s301 = vtos %v300
        %v302 = vstv %s301
        %v304 = vmul.f32 %v302, %v272
        %v305 = vmul.f32 %v302, %v273
        %v306 = vadd.f32 %v297, %v304
        %v307 = vadd.f32 %v298, %v305
        %v308 = vld [vmem:[%s2] sm:$0x1]
        %s310 = vtos %v308
        %v311 = vstv %s310
        %v313 = vadd.f32 %v306, %v311
        %v314 = vadd.f32 %v307, %v311
        %v315 = vld [vmem:[%s1 + $0x1] sm:$0x1]
        %s317 = vtos %v315
        %v318 = vstv %s317
        %v320 = vmul.f32 %v318, %v263
        %v321 = vmul.f32 %v318, %v264
        %322 = vrot.lane.b32.xlu0 %v315, 127
        %v323 = vpop.permute.xlu0 %322
        %s324 = vtos %v323
        %v325 = vstv %s324
        %v327 = vmul.f32 %v325, %v266
        %v328 = vmul.f32 %v325, %v267
        %v329 = vadd.f32 %v320, %v327
        %v330 = vadd.f32 %v321, %v328
        %331 = vrot.lane.b32.xlu0 %v315, 126
        %v332 = vpop.permute.xlu0 %331
        %s333 = vtos %v332
        %v334 = vstv %s333
        %v336 = vmul.f32 %v334, %v269
        %v337 = vmul.f32 %v334, %v270
        %v338 = vadd.f32 %v329, %v336
        %v339 = vadd.f32 %v330, %v337
        %340 = vrot.lane.b32.xlu0 %v315, 125
        %v341 = vpop.permute.xlu0 %340
        %s342 = vtos %v341
        %v343 = vstv %s342
        %v345 = vmul.f32 %v343, %v272
        %v346 = vmul.f32 %v343, %v273
        %v347 = vadd.f32 %v338, %v345
        %v348 = vadd.f32 %v339, %v346
        %v349 = vld [vmem:[%s2 + $0x1] sm:$0x1]
        %s351 = vtos %v349
        %v352 = vstv %s351
        %v354 = vadd.f32 %v347, %v352
        %v355 = vadd.f32 %v348, %v352
        %v356 = vld [vmem:[%s1 + $0x2] sm:$0x1]
        %s358 = vtos %v356
        %v359 = vstv %s358
        %v361 = vmul.f32 %v359, %v263
        %v362 = vmul.f32 %v359, %v264
        %363 = vrot.lane.b32.xlu0 %v356, 127
        %v364 = vpop.permute.xlu0 %363
        %s365 = vtos %v364
        %v366 = vstv %s365
        %v368 = vmul.f32 %v366, %v266
        %v369 = vmul.f32 %v366, %v267
        %v370 = vadd.f32 %v361, %v368
        %v371 = vadd.f32 %v362, %v369
        %372 = vrot.lane.b32.xlu0 %v356, 126
        %v373 = vpop.permute.xlu0 %372
        %s374 = vtos %v373
        %v375 = vstv %s374
        %v377 = vmul.f32 %v375, %v269
        %v378 = vmul.f32 %v375, %v270
        %v379 = vadd.f32 %v370, %v377
        %v380 = vadd.f32 %v371, %v378
        %381 = vrot.lane.b32.xlu0 %v356, 125
        %v382 = vpop.permute.xlu0 %381
        %s383 = vtos %v382
        %v384 = vstv %s383
        %v386 = vmul.f32 %v384, %v272
        %v387 = vmul.f32 %v384, %v273
        %v388 = vadd.f32 %v379, %v386
        %v389 = vadd.f32 %v380, %v387
        %v390 = vld [vmem:[%s2 + $0x2] sm:$0x1]
        %s392 = vtos %v390
        %v393 = vstv %s392
        %v395 = vadd.f32 %v388, %v393
        %v396 = vadd.f32 %v389, %v393
        %v397 = vld [vmem:[%s1 + $0x3] sm:$0x1]
        %s399 = vtos %v397
        %v400 = vstv %s399
        %v402 = vmul.f32 %v400, %v263
        %v403 = vmul.f32 %v400, %v264
        %404 = vrot.lane.b32.xlu0 %v397, 127
        %v405 = vpop.permute.xlu0 %404
        %s406 = vtos %v405
        %v407 = vstv %s406
        %v409 = vmul.f32 %v407, %v266
        %v410 = vmul.f32 %v407, %v267
        %v411 = vadd.f32 %v402, %v409
        %v412 = vadd.f32 %v403, %v410
        %413 = vrot.lane.b32.xlu0 %v397, 126
        %v414 = vpop.permute.xlu0 %413
        %s415 = vtos %v414
        %v416 = vstv %s415
        %v418 = vmul.f32 %v416, %v269
        %v419 = vmul.f32 %v416, %v270
        %v420 = vadd.f32 %v411, %v418
        %v421 = vadd.f32 %v412, %v419
        %422 = vrot.lane.b32.xlu0 %v397, 125
        %v423 = vpop.permute.xlu0 %422
        %s424 = vtos %v423
        %v425 = vstv %s424
        %v427 = vmul.f32 %v425, %v272
        %v428 = vmul.f32 %v425, %v273
        %v429 = vadd.f32 %v420, %v427
        %v430 = vadd.f32 %v421, %v428
        %v431 = vld [vmem:[%s2 + $0x3] sm:$0x1]
        %s433 = vtos %v431
        %v434 = vstv %s433
        %v436 = vadd.f32 %v429, %v434
        %v437 = vadd.f32 %v430, %v434
        %v438 = vld [vmem:[%s1 + $0x4] sm:$0x1]
        %s440 = vtos %v438
        %v441 = vstv %s440
        %v443 = vmul.f32 %v441, %v263
        %v444 = vmul.f32 %v441, %v264
        %445 = vrot.lane.b32.xlu0 %v438, 127
        %v446 = vpop.permute.xlu0 %445
        %s447 = vtos %v446
        %v448 = vstv %s447
        %v450 = vmul.f32 %v448, %v266
        %v451 = vmul.f32 %v448, %v267
        %v452 = vadd.f32 %v443, %v450
        %v453 = vadd.f32 %v444, %v451
        %454 = vrot.lane.b32.xlu0 %v438, 126
        %v455 = vpop.permute.xlu0 %454
        %s456 = vtos %v455
        %v457 = vstv %s456
        %v459 = vmul.f32 %v457, %v269
        %v460 = vmul.f32 %v457, %v270
        %v461 = vadd.f32 %v452, %v459
        %v462 = vadd.f32 %v453, %v460
        %463 = vrot.lane.b32.xlu0 %v438, 125
        %v464 = vpop.permute.xlu0 %463
        %s465 = vtos %v464
        %v466 = vstv %s465
        %v468 = vmul.f32 %v466, %v272
        %v469 = vmul.f32 %v466, %v273
        %v470 = vadd.f32 %v461, %v468
        %v471 = vadd.f32 %v462, %v469
        %v472 = vld [vmem:[%s2 + $0x4] sm:$0x1]
        %s474 = vtos %v472
        %v475 = vstv %s474
        %v477 = vadd.f32 %v470, %v475
        %v478 = vadd.f32 %v471, %v475
        %v479 = vld [vmem:[%s1 + $0x5] sm:$0x1]
        %s481 = vtos %v479
        %v482 = vstv %s481
        %v484 = vmul.f32 %v482, %v263
        %v485 = vmul.f32 %v482, %v264
        %486 = vrot.lane.b32.xlu0 %v479, 127
        %v487 = vpop.permute.xlu0 %486
        %s488 = vtos %v487
        %v489 = vstv %s488
        %v491 = vmul.f32 %v489, %v266
        %v492 = vmul.f32 %v489, %v267
        %v493 = vadd.f32 %v484, %v491
        %v494 = vadd.f32 %v485, %v492
        %495 = vrot.lane.b32.xlu0 %v479, 126
        %v496 = vpop.permute.xlu0 %495
        %s497 = vtos %v496
        %v498 = vstv %s497
        %v500 = vmul.f32 %v498, %v269
        %v501 = vmul.f32 %v498, %v270
        %v502 = vadd.f32 %v493, %v500
        %v503 = vadd.f32 %v494, %v501
        %504 = vrot.lane.b32.xlu0 %v479, 125
        %v505 = vpop.permute.xlu0 %504
        %s506 = vtos %v505
        %v507 = vstv %s506
        %v509 = vmul.f32 %v507, %v272
        %v510 = vmul.f32 %v507, %v273
        %v511 = vadd.f32 %v502, %v509
        %v512 = vadd.f32 %v503, %v510
        %v513 = vld [vmem:[%s2 + $0x5] sm:$0x1]
        %s515 = vtos %v513
        %v516 = vstv %s515
        %v518 = vadd.f32 %v511, %v516
        %v519 = vadd.f32 %v512, %v516
        %v520 = vlaneseq
        %v521 = vshrl.u32 %v520, 7
        %v522 = vsub.s32 0, %v521
        %v523 = vrot.slane %v395, %v522
        %v524 = vlaneseq
        %v525 = vshrl.u32 %v524, 7
        %v526 = vsub.s32 0, %v525
        %v527 = vrot.slane %v396, %v526
        %v528 = vmul.f32 %v523, %v313
        %v529 = vmul.f32 %v527, %v314
        %v530 = vlaneseq
        %v531 = vshrl.u32 %v530, 7
        %v532 = vsub.s32 0, %v531
        %v533 = vrot.slane %v436, %v532
        %v534 = vlaneseq
        %v535 = vshrl.u32 %v534, 7
        %v536 = vsub.s32 0, %v535
        %v537 = vrot.slane %v437, %v536
        %v538 = vmul.f32 %v533, %v354
        %v539 = vmul.f32 %v537, %v355
        %v540 = vadd.f32 %v528, %v538
        %v541 = vadd.f32 %v529, %v539
        %v542 = vlaneseq
        %v543 = vshrl.u32 %v542, 7
        %v544 = vsub.s32 0, %v543
        %v545 = vrot.slane %v477, %v544
        %v546 = vlaneseq
        %v547 = vshrl.u32 %v546, 7
        %v548 = vsub.s32 0, %v547
        %v549 = vrot.slane %v478, %v548
        %v550 = vmul.f32 %v545, %v540
        %v551 = vmul.f32 %v549, %v541
        %v552 = vadd.f32 %v550, 0.0
        %v553 = vadd.f32 %v551, 0.0
        %v554 = vlaneseq
        %v555 = vshrl.u32 %v554, 7
        %v556 = vsub.s32 0, %v555
        %v557 = vrot.slane %v518, %v556
        %v558 = vlaneseq
        %v559 = vshrl.u32 %v558, 7
        %v560 = vsub.s32 0, %v559
        %v561 = vrot.slane %v519, %v560
        %v562 = vmul.f32 %v557, %v540
        %v563 = vmul.f32 %v561, %v541
        %v564 = vadd.f32 %v562, 0.0
        %v565 = vadd.f32 %v563, 0.0
        %v566 = vlaneseq
        %v567 = vshrl.u32 %v566, 7
        %v568 = vsub.s32 1, %v567
        %v569 = vrot.slane %v395, %v568
        %v570 = vlaneseq
        %v571 = vshrl.u32 %v570, 7
        %v572 = vsub.s32 1, %v571
        %v573 = vrot.slane %v396, %v572
        %v574 = vmul.f32 %v569, %v313
        %v575 = vmul.f32 %v573, %v314
        %v576 = vlaneseq
        %v577 = vshrl.u32 %v576, 7
        %v578 = vsub.s32 1, %v577
        %v579 = vrot.slane %v436, %v578
        %v580 = vlaneseq
        %v581 = vshrl.u32 %v580, 7
        %v582 = vsub.s32 1, %v581
        %v583 = vrot.slane %v437, %v582
        %v584 = vmul.f32 %v579, %v354
        %v585 = vmul.f32 %v583, %v355
        %v586 = vadd.f32 %v574, %v584
        %v587 = vadd.f32 %v575, %v585
        %v588 = vlaneseq
        %v589 = vshrl.u32 %v588, 7
        %v590 = vsub.s32 1, %v589
        %v591 = vrot.slane %v477, %v590
        %v592 = vlaneseq
        %v593 = vshrl.u32 %v592, 7
        %v594 = vsub.s32 1, %v593
        %v595 = vrot.slane %v478, %v594
        %v596 = vmul.f32 %v591, %v586
        %v597 = vmul.f32 %v595, %v587
        %v598 = vadd.f32 %v552, %v596
        %v599 = vadd.f32 %v553, %v597
        %v600 = vlaneseq
        %v601 = vshrl.u32 %v600, 7
        %v602 = vsub.s32 1, %v601
        %v603 = vrot.slane %v518, %v602
        %v604 = vlaneseq
        %v605 = vshrl.u32 %v604, 7
        %v606 = vsub.s32 1, %v605
        %v607 = vrot.slane %v519, %v606
        %v608 = vmul.f32 %v603, %v586
        %v609 = vmul.f32 %v607, %v587
        %v610 = vadd.f32 %v564, %v608
        %v611 = vadd.f32 %v565, %v609
        %v612 = vlaneseq
        %v613 = vshrl.u32 %v612, 7
        %v614 = vsub.s32 2, %v613
        %v615 = vrot.slane %v395, %v614
        %v616 = vlaneseq
        %v617 = vshrl.u32 %v616, 7
        %v618 = vsub.s32 2, %v617
        %v619 = vrot.slane %v396, %v618
        %v620 = vmul.f32 %v615, %v313
        %v621 = vmul.f32 %v619, %v314
        %v622 = vlaneseq
        %v623 = vshrl.u32 %v622, 7
        %v624 = vsub.s32 2, %v623
        %v625 = vrot.slane %v436, %v624
        %v626 = vlaneseq
        %v627 = vshrl.u32 %v626, 7
        %v628 = vsub.s32 2, %v627
        %v629 = vrot.slane %v437, %v628
        %v630 = vmul.f32 %v625, %v354
        %v631 = vmul.f32 %v629, %v355
        %v632 = vadd.f32 %v620, %v630
        %v633 = vadd.f32 %v621, %v631
        %v634 = vlaneseq
        %v635 = vshrl.u32 %v634, 7
        %v636 = vsub.s32 2, %v635
        %v637 = vrot.slane %v477, %v636
        %v638 = vlaneseq
        %v639 = vshrl.u32 %v638, 7
        %v640 = vsub.s32 2, %v639
        %v641 = vrot.slane %v478, %v640
        %v642 = vmul.f32 %v637, %v632
        %v643 = vmul.f32 %v641, %v633
        %v644 = vadd.f32 %v598, %v642
        %v645 = vadd.f32 %v599, %v643
        %v646 = vlaneseq
        %v647 = vshrl.u32 %v646, 7
        %v648 = vsub.s32 2, %v647
        %v649 = vrot.slane %v518, %v648
        %v650 = vlaneseq
        %v651 = vshrl.u32 %v650, 7
        %v652 = vsub.s32 2, %v651
        %v653 = vrot.slane %v519, %v652
        %v654 = vmul.f32 %v649, %v632
        %v655 = vmul.f32 %v653, %v633
        %v656 = vadd.f32 %v610, %v654
        %v657 = vadd.f32 %v611, %v655
        %v658 = vlaneseq
        %v659 = vshrl.u32 %v658, 7
        %v660 = vsub.s32 3, %v659
        %v661 = vrot.slane %v395, %v660
        %v662 = vlaneseq
        %v663 = vshrl.u32 %v662, 7
        %v664 = vsub.s32 3, %v663
        %v665 = vrot.slane %v396, %v664
        %v666 = vmul.f32 %v661, %v313
        %v667 = vmul.f32 %v665, %v314
        %v668 = vlaneseq
        %v669 = vshrl.u32 %v668, 7
        %v670 = vsub.s32 3, %v669
        %v671 = vrot.slane %v436, %v670
        %v672 = vlaneseq
        %v673 = vshrl.u32 %v672, 7
        %v674 = vsub.s32 3, %v673
        %v675 = vrot.slane %v437, %v674
        %v676 = vmul.f32 %v671, %v354
        %v677 = vmul.f32 %v675, %v355
        %v678 = vadd.f32 %v666, %v676
        %v679 = vadd.f32 %v667, %v677
        %v680 = vlaneseq
        %v681 = vshrl.u32 %v680, 7
        %v682 = vsub.s32 3, %v681
        %v683 = vrot.slane %v477, %v682
        %v684 = vlaneseq
        %v685 = vshrl.u32 %v684, 7
        %v686 = vsub.s32 3, %v685
        %v687 = vrot.slane %v478, %v686
        %v688 = vmul.f32 %v683, %v678
        %v689 = vmul.f32 %v687, %v679
        %v690 = vadd.f32 %v644, %v688
        %v691 = vadd.f32 %v645, %v689
        %v692 = vlaneseq
        %v693 = vshrl.u32 %v692, 7
        %v694 = vsub.s32 3, %v693
        %v695 = vrot.slane %v518, %v694
        %v696 = vlaneseq
        %v697 = vshrl.u32 %v696, 7
        %v698 = vsub.s32 3, %v697
        %v699 = vrot.slane %v519, %v698
        %v700 = vmul.f32 %v695, %v678
        %v701 = vmul.f32 %v699, %v679
        %v702 = vadd.f32 %v656, %v700
        %v703 = vadd.f32 %v657, %v701
        %v704 = vlaneseq
        %v705 = vshrl.u32 %v704, 7
        %v706 = vsub.s32 4, %v705
        %v707 = vrot.slane %v395, %v706
        %v708 = vlaneseq
        %v709 = vshrl.u32 %v708, 7
        %v710 = vsub.s32 4, %v709
        %v711 = vrot.slane %v396, %v710
        %v712 = vmul.f32 %v707, %v313
        %v713 = vmul.f32 %v711, %v314
        %v714 = vlaneseq
        %v715 = vshrl.u32 %v714, 7
        %v716 = vsub.s32 4, %v715
        %v717 = vrot.slane %v436, %v716
        %v718 = vlaneseq
        %v719 = vshrl.u32 %v718, 7
        %v720 = vsub.s32 4, %v719
        %v721 = vrot.slane %v437, %v720
        %v722 = vmul.f32 %v717, %v354
        %v723 = vmul.f32 %v721, %v355
        %v724 = vadd.f32 %v712, %v722
        %v725 = vadd.f32 %v713, %v723
        %v726 = vlaneseq
        %v727 = vshrl.u32 %v726, 7
        %v728 = vsub.s32 4, %v727
        %v729 = vrot.slane %v477, %v728
        %v730 = vlaneseq
        %v731 = vshrl.u32 %v730, 7
        %v732 = vsub.s32 4, %v731
        %v733 = vrot.slane %v478, %v732
        %v734 = vmul.f32 %v729, %v724
        %v735 = vmul.f32 %v733, %v725
        %v736 = vadd.f32 %v690, %v734
        %v737 = vadd.f32 %v691, %v735
        %v738 = vlaneseq
        %v739 = vshrl.u32 %v738, 7
        %v740 = vsub.s32 4, %v739
        %v741 = vrot.slane %v518, %v740
        %v742 = vlaneseq
        %v743 = vshrl.u32 %v742, 7
        %v744 = vsub.s32 4, %v743
        %v745 = vrot.slane %v519, %v744
        %v746 = vmul.f32 %v741, %v724
        %v747 = vmul.f32 %v745, %v725
        %v748 = vadd.f32 %v702, %v746
        %v749 = vadd.f32 %v703, %v747
        %v750 = vlaneseq
        %v751 = vshrl.u32 %v750, 7
        %v752 = vsub.s32 5, %v751
        %v753 = vrot.slane %v395, %v752
        %v754 = vlaneseq
        %v755 = vshrl.u32 %v754, 7
        %v756 = vsub.s32 5, %v755
        %v757 = vrot.slane %v396, %v756
        %v758 = vmul.f32 %v753, %v313
        %v759 = vmul.f32 %v757, %v314
        %v760 = vlaneseq
        %v761 = vshrl.u32 %v760, 7
        %v762 = vsub.s32 5, %v761
        %v763 = vrot.slane %v436, %v762
        %v764 = vlaneseq
        %v765 = vshrl.u32 %v764, 7
        %v766 = vsub.s32 5, %v765
        %v767 = vrot.slane %v437, %v766
        %v768 = vmul.f32 %v763, %v354
        %v769 = vmul.f32 %v767, %v355
        %v770 = vadd.f32 %v758, %v768
        %v771 = vadd.f32 %v759, %v769
        %v772 = vlaneseq
        %v773 = vshrl.u32 %v772, 7
        %v774 = vsub.s32 5, %v773
        %v775 = vrot.slane %v477, %v774
        %v776 = vlaneseq
        %v777 = vshrl.u32 %v776, 7
        %v778 = vsub.s32 5, %v777
        %v779 = vrot.slane %v478, %v778
        %v780 = vmul.f32 %v775, %v770
        %v781 = vmul.f32 %v779, %v771
        %v782 = vadd.f32 %v736, %v780
        %v783 = vadd.f32 %v737, %v781
        %v784 = vlaneseq
        %v785 = vshrl.u32 %v784, 7
        %v786 = vsub.s32 5, %v785
        %v787 = vrot.slane %v518, %v786
        %v788 = vlaneseq
        %v789 = vshrl.u32 %v788, 7
        %v790 = vsub.s32 5, %v789
        %v791 = vrot.slane %v519, %v790
        %v792 = vmul.f32 %v787, %v770
        %v793 = vmul.f32 %v791, %v771
        %v794 = vadd.f32 %v748, %v792
        %v795 = vadd.f32 %v749, %v793
        %v796 = vlaneseq
        %v797 = vshrl.u32 %v796, 7
        %v798 = vsub.s32 6, %v797
        %v799 = vrot.slane %v395, %v798
        %v800 = vlaneseq
        %v801 = vshrl.u32 %v800, 7
        %v802 = vsub.s32 6, %v801
        %v803 = vrot.slane %v396, %v802
        %v804 = vmul.f32 %v799, %v313
        %v805 = vmul.f32 %v803, %v314
        %v806 = vlaneseq
        %v807 = vshrl.u32 %v806, 7
        %v808 = vsub.s32 6, %v807
        %v809 = vrot.slane %v436, %v808
        %v810 = vlaneseq
        %v811 = vshrl.u32 %v810, 7
        %v812 = vsub.s32 6, %v811
        %v813 = vrot.slane %v437, %v812
        %v814 = vmul.f32 %v809, %v354
        %v815 = vmul.f32 %v813, %v355
        %v816 = vadd.f32 %v804, %v814
        %v817 = vadd.f32 %v805, %v815
        %v818 = vlaneseq
        %v819 = vshrl.u32 %v818, 7
        %v820 = vsub.s32 6, %v819
        %v821 = vrot.slane %v477, %v820
        %v822 = vlaneseq
        %v823 = vshrl.u32 %v822, 7
        %v824 = vsub.s32 6, %v823
        %v825 = vrot.slane %v478, %v824
        %v826 = vmul.f32 %v821, %v816
        %v827 = vmul.f32 %v825, %v817
        %v828 = vadd.f32 %v782, %v826
        %v829 = vadd.f32 %v783, %v827
        %v830 = vlaneseq
        %v831 = vshrl.u32 %v830, 7
        %v832 = vsub.s32 6, %v831
        %v833 = vrot.slane %v518, %v832
        %v834 = vlaneseq
        %v835 = vshrl.u32 %v834, 7
        %v836 = vsub.s32 6, %v835
        %v837 = vrot.slane %v519, %v836
        %v838 = vmul.f32 %v833, %v816
        %v839 = vmul.f32 %v837, %v817
        %v840 = vadd.f32 %v794, %v838
        %v841 = vadd.f32 %v795, %v839
        %v842 = vlaneseq
        %v843 = vshrl.u32 %v842, 7
        %v844 = vsub.s32 7, %v843
        %v845 = vrot.slane %v395, %v844
        %v846 = vlaneseq
        %v847 = vshrl.u32 %v846, 7
        %v848 = vsub.s32 7, %v847
        %v849 = vrot.slane %v396, %v848
        %v850 = vmul.f32 %v845, %v313
        %v851 = vmul.f32 %v849, %v314
        %v852 = vlaneseq
        %v853 = vshrl.u32 %v852, 7
        %v854 = vsub.s32 7, %v853
        %v855 = vrot.slane %v436, %v854
        %v856 = vlaneseq
        %v857 = vshrl.u32 %v856, 7
        %v858 = vsub.s32 7, %v857
        %v859 = vrot.slane %v437, %v858
        %v860 = vmul.f32 %v855, %v354
        %v861 = vmul.f32 %v859, %v355
        %v862 = vadd.f32 %v850, %v860
        %v863 = vadd.f32 %v851, %v861
        %v864 = vlaneseq
        %v865 = vshrl.u32 %v864, 7
        %v866 = vsub.s32 7, %v865
        %v867 = vrot.slane %v477, %v866
        %v868 = vlaneseq
        %v869 = vshrl.u32 %v868, 7
        %v870 = vsub.s32 7, %v869
        %v871 = vrot.slane %v478, %v870
        %v872 = vmul.f32 %v867, %v862
        %v873 = vmul.f32 %v871, %v863
        %v874 = vadd.f32 %v828, %v872
        %v875 = vadd.f32 %v829, %v873
        %v876 = vlaneseq
        %v877 = vshrl.u32 %v876, 7
        %v878 = vsub.s32 7, %v877
        %v879 = vrot.slane %v518, %v878
        %v880 = vlaneseq
        %v881 = vshrl.u32 %v880, 7
        %v882 = vsub.s32 7, %v881
        %v883 = vrot.slane %v519, %v882
        %v884 = vmul.f32 %v879, %v862
        %v885 = vmul.f32 %v883, %v863
        %v886 = vadd.f32 %v840, %v884
        %v887 = vadd.f32 %v841, %v885
        %v888 = vld [vmem:[%s4] sm:$0x1]
        %s890 = vtos %v888
        %v891 = vstv %s890
        %v893 = vadd.f32 %v263, %v891
        %v894 = vadd.f32 %v264, %v891
        %v895 = vld [vmem:[%s3] sm:$0x1]
        %s897 = vtos %v895
        %v898 = vstv %s897
        %v900 = vmul.f32 %v898, %v874
        %v901 = vmul.f32 %v898, %v875
        %v902 = vadd.f32 %v893, %v900
        %v903 = vadd.f32 %v894, %v901
        %904 = vrot.lane.b32.xlu0 %v895, 127
        %v905 = vpop.permute.xlu0 %904
        %s906 = vtos %v905
        %v907 = vstv %s906
        %v909 = vmul.f32 %v907, %v886
        %v910 = vmul.f32 %v907, %v887
        %v911 = vadd.f32 %v902, %v909
        %v912 = vadd.f32 %v903, %v910
        %913 = vst [vmem:[%s260] sm:$0xff] %v911
        %914 = vst [vmem:[%s260 + $0x8] sm:$0xff] %v912
        %v915 = vld [vmem:[%s4 + $0x1] sm:$0x1]
        %s917 = vtos %v915
        %v918 = vstv %s917
        %v920 = vadd.f32 %v266, %v918
        %v921 = vadd.f32 %v267, %v918
        %v922 = vld [vmem:[%s3 + $0x1] sm:$0x1]
        %s924 = vtos %v922
        %v925 = vstv %s924
        %v927 = vmul.f32 %v925, %v874
        %v928 = vmul.f32 %v925, %v875
        %v929 = vadd.f32 %v920, %v927
        %v930 = vadd.f32 %v921, %v928
        %931 = vrot.lane.b32.xlu0 %v922, 127
        %v932 = vpop.permute.xlu0 %931
        %s933 = vtos %v932
        %v934 = vstv %s933
        %v936 = vmul.f32 %v934, %v886
        %v937 = vmul.f32 %v934, %v887
        %v938 = vadd.f32 %v929, %v936
        %v939 = vadd.f32 %v930, %v937
        %s940 = scalar_lea.vmem %s260, 16 [#allocation5]
        %941 = vst [vmem:[%s940] sm:$0xff] %v938
        %942 = vst [vmem:[%s940 + $0x8] sm:$0xff] %v939
        %v943 = vld [vmem:[%s4 + $0x2] sm:$0x1]
        %s945 = vtos %v943
        %v946 = vstv %s945
        %v948 = vadd.f32 %v269, %v946
        %v949 = vadd.f32 %v270, %v946
        %v950 = vld [vmem:[%s3 + $0x2] sm:$0x1]
        %s952 = vtos %v950
        %v953 = vstv %s952
        %v955 = vmul.f32 %v953, %v874
        %v956 = vmul.f32 %v953, %v875
        %v957 = vadd.f32 %v948, %v955
        %v958 = vadd.f32 %v949, %v956
        %959 = vrot.lane.b32.xlu0 %v950, 127
        %v960 = vpop.permute.xlu0 %959
        %s961 = vtos %v960
        %v962 = vstv %s961
        %v964 = vmul.f32 %v962, %v886
        %v965 = vmul.f32 %v962, %v887
        %v966 = vadd.f32 %v957, %v964
        %v967 = vadd.f32 %v958, %v965
        %s968 = scalar_lea.vmem %s260, 32 [#allocation5]
        %969 = vst [vmem:[%s968] sm:$0xff] %v966
        %970 = vst [vmem:[%s968 + $0x8] sm:$0xff] %v967
        %v971 = vld [vmem:[%s4 + $0x3] sm:$0x1]
        %s973 = vtos %v971
        %v974 = vstv %s973
        %v976 = vadd.f32 %v272, %v974
        %v977 = vadd.f32 %v273, %v974
        %v978 = vld [vmem:[%s3 + $0x3] sm:$0x1]
        %s980 = vtos %v978
        %v981 = vstv %s980
        %v983 = vmul.f32 %v981, %v874
        %v984 = vmul.f32 %v981, %v875
        %v985 = vadd.f32 %v976, %v983
        %v986 = vadd.f32 %v977, %v984
        %987 = vrot.lane.b32.xlu0 %v978, 127
        %v988 = vpop.permute.xlu0 %987
        %s989 = vtos %v988
        %v990 = vstv %s989
        %v992 = vmul.f32 %v990, %v886
        %v993 = vmul.f32 %v990, %v887
        %v994 = vadd.f32 %v985, %v992
        %v995 = vadd.f32 %v986, %v993
        %s996 = scalar_lea.vmem %s260, 48 [#allocation5]
        %997 = vst [vmem:[%s996] sm:$0xff] %v994
        %998 = vst [vmem:[%s996 + $0x8] sm:$0xff] %v995
        %s999 = sand.u32 %s156, 1
        %s1000 = scalar_lea.sflag [#allocation4], %s999
        %s1001 = sand.u32 %s156, 1
        %s1002 = smul.addr %s1001, 64
        %s1003 = scalar_lea.vmem [#allocation5], %s1002
        // Predicated region
        $region45: #{tpu_custom_call.1} parent=39 // pred_check
          %p1004 = pneg %p166
        $region46: #{tpu_custom_call.1} parent=39 // pred_check_branch
          %1006 = sbr.rel (%p1004) target = $region48
        $region47: #{tpu_custom_call.1} parent=39 // pred_region
          %s1007 = smul.u32 2, %s27
          %s1009 = ssub.s32 1024, 1024
          %1010 = vsyncadd %s1000, %s1009
          %s1011 = smul.addr %s26, 8
          %s1012 = sadd.s32 %s1007, %s1011
          %s1013 = smul.addr %s1012, 128
          %s1014 = scalar_lea.hbm %s5, %s1013
          %s1015 = sshll.u32 %s1003, 4
          %s1016 = int_to_ptr.vmem [resolvable:$true] %s1015
          %1021 = dma.vmem_to_hbm [thread:$0]  %s1016, 1024, %s1014, %s1000, 256, 256, 16
        $region48: #{tpu_custom_call.1} parent=39 // pred_fallthru
          _
      $region40: #{tpu_custom_call.1} parent=5 // pred_fallthru
        _
      %p1022 = scmp.le.s32.totalorder 2, %s17
      // Predicated region
      $region49: #{tpu_custom_call.1} parent=5 // pred_check
        %p1023 = pneg %p1022
      $region50: #{tpu_custom_call.1} parent=5 // pred_check_branch
        %1025 = sbr.rel (%p1023) target = $region52
      $region51: #{tpu_custom_call.1} parent=5 // pred_region
        %s1026 = ssub.s32 %s17, 2
        // Predicated region
        $region53: #{tpu_custom_call.1} parent=51 // pred_check
          %p1027 = pneg %p172
        $region54: #{tpu_custom_call.1} parent=51 // pred_check_branch
          %1029 = sbr.rel (%p1027) target = $region56
        $region55: #{tpu_custom_call.1} parent=51 // pred_region
          %s1030 = sand.u32 %s157, 1
          %s1031 = scalar_lea.sflag [#allocation4], %s1030
          %s1032 = sand.u32 %s157, 1
          %s1033 = smul.addr %s1032, 64
          %s1034 = scalar_lea.vmem [#allocation5], %s1033
          %1035 = dma.done %s1031, 1024
        $region56: #{tpu_custom_call.1} parent=51 // pred_fallthru
          _
      $region52: #{tpu_custom_call.1} parent=5 // pred_fallthru
        _
    $region6: #{tpu_custom_call.1} parent=1 // loop_footer
      %s21 = sadd.s32 1, %s17
    $region7: #{tpu_custom_call.1} parent=1 // loop_footer_branch
      %16 = sbr.rel target = $region3
    $region8: #{tpu_custom_call.1} parent=1 // loop_exit
      _
    %1036 = vsyncpa [#allocation3], 1
    %s1037 = scalar_lea.sflag [#allocation3], 1
    %1038 = vsyncpa %s1037, 1
    %1039 = vsyncpa [#allocation4], 1
    %s1040 = scalar_lea.sflag [#allocation4], 1
    %1041 = vsyncpa %s1040, 1

</llo_original>
